<compile_context>
chip_gen: v7x
topology: tpu7x:2x2x1
jax: 0.10.0
libtpu: 0.0.40
codegen_flags: <defaults>
</compile_context>

<pallas_src>
import math

import jax
import jax.numpy as jnp
import numpy as np
from jax import lax
from jax.experimental import pallas as pl
from jax.experimental.pallas import tpu as pltpu

# ----------------------------- model config ---------------------------------
B = 2           # batch
S = 8           # sequence length
D = 32          # d_model
H = 4           # nhead
HD = D // H     # head dim
FF = 64         # dim_feedforward
L = 2           # num_layers
LN_EPS = 1e-5
BS = B * S      # activation rows
BHS = B * H * S  # score columns: (batch, head, key) flattened
NEG = -1e9


# ------------------------- static structural constants -----------------------
def _build_constants():
    c = np.arange(BHS)
    col_b = c // (H * S)
    col_h = (c // S) % H
    col_j = c % S
    r = np.arange(BS)
    row_b = r // S
    row_j = r % S
    # Row replication: K_exp = R @ k selects key row (col_b, col_j) for column c.
    rrep = ((row_b[None, :] == col_b[:, None]) &
            (row_j[None, :] == col_j[:, None])).astype(np.float32)       # (BHS, BS)
    # Head-feature mask: keep only the features belonging to the column's head.
    e = np.arange(D)
    hmask = (col_h[:, None] == (e[None, :] // HD)).astype(np.float32)    # (BHS, D)
    # Additive batch mask on scores: 0 for same batch, -1e9 otherwise.
    amask = np.where(row_b[:, None] == col_b[None, :],
                     0.0, NEG).astype(np.float32)                        # (BS, BHS)
    # Per-head group sum: broadcasts a head's softmax denominator over its
    # columns.  Grouped by head only (cross-batch e entries are exactly 0),
    # so cross-batch columns see a finite denominator -> no 0/0.
    gsum = (col_h[:, None] == col_h[None, :]).astype(np.float32)         # (BHS, BHS)
    # LayerNorm mean matrix: x @ MEAN gives the row mean broadcast over D lanes.
    mean_mat = np.full((D, D), 1.0 / D, dtype=np.float32)                # (D, D)
    return rrep, hmask, amask, gsum, mean_mat


RREP_NP, HMASK_NP, AMASK_NP, GSUM_NP, MEAN_NP = _build_constants()


# ------------------------------ kernel ---------------------------------------
def _layer_norm(x, w, b, mean_mat):
    # MXU-based moments: two independent matmuls give the broadcasted row mean
    # of x and of x*x (no cross-lane reduce, no broadcast on the XLU).
    mu = jnp.dot(x, mean_mat, preferred_element_type=jnp.float32)
    msq = jnp.dot(x * x, mean_mat, preferred_element_type=jnp.float32)
    var = msq - mu * mu
    return (x - mu) * lax.rsqrt(var + LN_EPS) * w + b


def encoder_stack_kernel(x_ref, addend_ref, rrep_ref, hmask_ref, amask_ref,
                         gsum_ref, mean_ref,
                         wqkv_ref, wo_ref, bo_ref,
                         w1_ref, b1_ref, w2_ref, b2_ref,
                         ln1w_ref, ln1b_ref, ln2w_ref, ln2b_ref,
                         out_ref):
    rrep = rrep_ref[...]        # (BHS, BS)   row replication
    hmask = hmask_ref[...]      # (BHS, D)    head-feature mask
    amask = amask_ref[...]      # (BS, BHS)   additive cross-batch mask (0 / -1e9)
    gsum = gsum_ref[...]        # (BHS, BHS)  per-head denominator broadcast
    mean_mat = mean_ref[...]    # (D, D)      1/D everywhere

    x = x_ref[...]              # (BS, D) running activation, 2-D throughout

    for l in range(L):          # static, fully unrolled layer loop
        # --- fused QKV projection; pos contribution + biases precomputed ---
        qkv = (jnp.dot(x, wqkv_ref[l], preferred_element_type=jnp.float32)
               + addend_ref[l])                                    # (BS, 3D)
        q = qkv[:, :D]                  # already scaled by 1/sqrt(HD)
        k = qkv[:, D:2 * D]
        v = qkv[:, 2 * D:]

        # --- block-diagonal head expansion via MXU replication (no concat) ---
        k_exp = jnp.dot(rrep, k, preferred_element_type=jnp.float32) * hmask  # (BHS, D)
        v_exp = jnp.dot(rrep, v, preferred_element_type=jnp.float32) * hmask  # (BHS, D)

        # --- scores over (batch, head, key) columns; all 2-D matmuls ---
        s = jnp.einsum('qe,ce->qc', q, k_exp,
                       preferred_element_type=jnp.float32) + amask            # (BS, BHS)
        s = s - jnp.max(s, axis=-1, keepdims=True)
        e = jnp.exp(s)                   # masked columns underflow to exactly 0
        denom = jnp.dot(e, gsum, preferred_element_type=jnp.float32)          # (BS, BHS)
        p = e / denom                    # exact division (review concern)

        attn = jnp.dot(p, v_exp, preferred_element_type=jnp.float32)          # (BS, D)
        attn_out = (jnp.dot(attn, wo_ref[l], preferred_element_type=jnp.float32)
                    + bo_ref[l])                                               # (BS, D)

        # --- add & norm 1 ---
        x1 = _layer_norm(x + attn_out, ln1w_ref[l], ln1b_ref[l], mean_mat)

        # --- feed-forward (ReLU) ---
        h1 = jnp.maximum(
            jnp.dot(x1, w1_ref[l], preferred_element_type=jnp.float32) + b1_ref[l],
            0.0)
        ff = jnp.dot(h1, w2_ref[l], preferred_element_type=jnp.float32) + b2_ref[l]

        # --- add & norm 2 ---
        x = _layer_norm(x1 + ff, ln2w_ref[l], ln2b_ref[l], mean_mat)

    out_ref[...] = x


# ------------------------------ wrapper --------------------------------------
@jax.jit
def transformer_encoder(src, pos, params):
    scale = 1.0 / math.sqrt(HD)
    wqkv = params['wqkv']                                    # (L, 3D, D) (out, in)
    bqkv = params['bqkv']                                    # (L, 1, 3D)

    # Pre-transpose to (in, out); fold attention scale into Q weights/bias.
    wq_t = jnp.swapaxes(wqkv[:, 0:D, :], 1, 2) * scale       # (L, D, D)
    wk_t = jnp.swapaxes(wqkv[:, D:2 * D, :], 1, 2)           # (L, D, D)
    wv_t = jnp.swapaxes(wqkv[:, 2 * D:, :], 1, 2)            # (L, D, D)
    wqkv_t = jnp.concatenate([wq_t, wk_t, wv_t], axis=2)     # (L, D, 3D)

    src2d = src.reshape(BS, D)
    pos2d = pos.reshape(BS, D)

    # pos is loop-invariant: hoist its Q/K contribution (+ all biases) into a
    # per-layer additive term applied to the fused QKV projection output.
    pos_qk = jnp.einsum('nd,lde->lne', pos2d, wqkv_t[:, :, :2 * D])   # (L, BS, 2D)
    bqk = jnp.concatenate([bqkv[:, :, :D] * scale,
                           bqkv[:, :, D:2 * D]], axis=2)              # (L, 1, 2D)
    bv = bqkv[:, :, 2 * D:]                                           # (L, 1, D)
    addend = jnp.concatenate(
        [pos_qk + bqk, jnp.broadcast_to(bv, (L, BS, D))], axis=2)     # (L, BS, 3D)

    wo_t = jnp.swapaxes(params['wo'], 1, 2)                  # (L, D, D)
    w1_t = jnp.swapaxes(params['w1'], 1, 2)                  # (L, D, FF)
    w2_t = jnp.swapaxes(params['w2'], 1, 2)                  # (L, FF, D)

    vmem = pl.BlockSpec(memory_space=pltpu.MemorySpace.VMEM)
    out2d = pl.pallas_call(
        encoder_stack_kernel,
        out_shape=jax.ShapeDtypeStruct((BS, D), jnp.float32),
        in_specs=[vmem] * 18,
        out_specs=vmem,
    )(src2d, addend,
      jnp.asarray(RREP_NP), jnp.asarray(HMASK_NP), jnp.asarray(AMASK_NP),
      jnp.asarray(GSUM_NP), jnp.asarray(MEAN_NP),
      wqkv_t, wo_t, params['bo'],
      w1_t, params['b1'], w2_t, params['b2'],
      params['ln1w'], params['ln1b'], params['ln2w'], params['ln2b'])

    return out2d.reshape(B, S, D)


# --------------------------- plain-JAX reference ------------------------------
def encoder_ref(src, pos, params):
    out = src
    for l in range(L):
        wqkv, bqkv = params['wqkv'][l], params['bqkv'][l, 0]
        wo, bo = params['wo'][l], params['bo'][l, 0]
        w1, b1 = params['w1'][l], params['b1'][l, 0]
        w2, b2 = params['w2'][l], params['b2'][l, 0]
        ln1w, ln1b = params['ln1w'][l, 0], params['ln1b'][l, 0]
        ln2w, ln2b = params['ln2w'][l, 0], params['ln2b'][l, 0]

        q_in = out + pos
        qp = jnp.einsum('bsd,ed->bse', q_in, wqkv[0:D]) + bqkv[0:D]
        kp = jnp.einsum('bsd,ed->bse', q_in, wqkv[D:2 * D]) + bqkv[D:2 * D]
        vp = jnp.einsum('bsd,ed->bse', out, wqkv[2 * D:]) + bqkv[2 * D:]
        qh = qp.reshape(B, S, H, HD)
        kh = kp.reshape(B, S, H, HD)
        vh = vp.reshape(B, S, H, HD)
        s = jnp.einsum('bqhd,bkhd->bhqk', qh, kh) / math.sqrt(HD)
        p = jax.nn.softmax(s, axis=-1)
        attn = jnp.einsum('bhqk,bkhd->bqhd', p, vh).reshape(B, S, D)
        attn = jnp.einsum('bsd,ed->bse', attn, wo) + bo

        def ln(x, w, b):
            mu = jnp.mean(x, -1, keepdims=True)
            var = jnp.mean((x - mu) ** 2, -1, keepdims=True)
            return (x - mu) / jnp.sqrt(var + LN_EPS) * w + b

        x1 = ln(out + attn, ln1w, ln1b)
        h1 = jax.nn.relu(jnp.einsum('bsd,fd->bsf', x1, w1) + b1)
        ff = jnp.einsum('bsf,df->bsd', h1, w2) + b2
        out = ln(x1 + ff, ln2w, ln2b)
    return out


# ------------------------------- main -----------------------------------------
if __name__ == "__main__":
    key = jax.random.PRNGKey(0)
    ks = jax.random.split(key, 16)

    def nrm(k, shape, scale=0.05):
        return (scale * jax.random.normal(k, shape)).astype(jnp.float32)

    params = {
        'wqkv': nrm(ks[0], (L, 3 * D, D)),
        'bqkv': nrm(ks[1], (L, 1, 3 * D)),
        'wo':   nrm(ks[2], (L, D, D)),
        'bo':   nrm(ks[3], (L, 1, D)),
        'w1':   nrm(ks[4], (L, FF, D)),
        'b1':   nrm(ks[5], (L, 1, FF)),
        'w2':   nrm(ks[6], (L, D, FF)),
        'b2':   nrm(ks[7], (L, 1, D)),
        'ln1w': jnp.ones((L, 1, D), jnp.float32),
        'ln1b': jnp.zeros((L, 1, D), jnp.float32),
        'ln2w': jnp.ones((L, 1, D), jnp.float32),
        'ln2b': jnp.zeros((L, 1, D), jnp.float32),
    }

    src = nrm(ks[8], (B, S, D), scale=1.0)
    pos = nrm(ks[9], (B, S, D), scale=1.0)

    out = transformer_encoder(src, pos, params)
    out = jax.block_until_ready(out)

    ref = jax.block_until_ready(encoder_ref(src, pos, params))
    np.testing.assert_allclose(np.asarray(out), np.asarray(ref),
                               rtol=2e-3, atol=2e-3)
    print("KERNEL_OK")
</pallas_src>

<mosaic_0001>
module attributes {stable_mosaic.version = 11 : i64} {
  func.func @encoder_stack_kernel(%arg0: memref<16x32xf32, #tpu.memory_space<vmem>>, %arg1: memref<2x16x96xf32, #tpu.memory_space<vmem>>, %arg2: memref<64x16xf32, #tpu.memory_space<vmem>>, %arg3: memref<64x32xf32, #tpu.memory_space<vmem>>, %arg4: memref<16x64xf32, #tpu.memory_space<vmem>>, %arg5: memref<64x64xf32, #tpu.memory_space<vmem>>, %arg6: memref<32x32xf32, #tpu.memory_space<vmem>>, %arg7: memref<2x32x96xf32, #tpu.memory_space<vmem>>, %arg8: memref<2x32x32xf32, #tpu.memory_space<vmem>>, %arg9: memref<2x1x32xf32, #tpu.memory_space<vmem>>, %arg10: memref<2x32x64xf32, #tpu.memory_space<vmem>>, %arg11: memref<2x1x64xf32, #tpu.memory_space<vmem>>, %arg12: memref<2x64x32xf32, #tpu.memory_space<vmem>>, %arg13: memref<2x1x32xf32, #tpu.memory_space<vmem>>, %arg14: memref<2x1x32xf32, #tpu.memory_space<vmem>>, %arg15: memref<2x1x32xf32, #tpu.memory_space<vmem>>, %arg16: memref<2x1x32xf32, #tpu.memory_space<vmem>>, %arg17: memref<2x1x32xf32, #tpu.memory_space<vmem>>, %arg18: memref<16x32xf32, #tpu.memory_space<vmem>>) attributes {dimension_semantics = [], scalar_prefetch = 0 : i64, scratch_operands = 0 : i64, tpu.core_type = #tpu.core_type<tc>} {
    %c0 = arith.constant 0 : index
    %c0_0 = arith.constant 0 : index
    %0 = vector.load %arg2[%c0, %c0_0] : memref<64x16xf32, #tpu.memory_space<vmem>>, vector<64x16xf32>
    %c0_1 = arith.constant 0 : index
    %c0_2 = arith.constant 0 : index
    %1 = vector.load %arg3[%c0_1, %c0_2] : memref<64x32xf32, #tpu.memory_space<vmem>>, vector<64x32xf32>
    %c0_3 = arith.constant 0 : index
    %c0_4 = arith.constant 0 : index
    %2 = vector.load %arg4[%c0_3, %c0_4] : memref<16x64xf32, #tpu.memory_space<vmem>>, vector<16x64xf32>
    %c0_5 = arith.constant 0 : index
    %c0_6 = arith.constant 0 : index
    %3 = vector.load %arg5[%c0_5, %c0_6] : memref<64x64xf32, #tpu.memory_space<vmem>>, vector<64x64xf32>
    %c0_7 = arith.constant 0 : index
    %c0_8 = arith.constant 0 : index
    %4 = vector.load %arg6[%c0_7, %c0_8] : memref<32x32xf32, #tpu.memory_space<vmem>>, vector<32x32xf32>
    %c0_9 = arith.constant 0 : index
    %c0_10 = arith.constant 0 : index
    %5 = vector.load %arg0[%c0_9, %c0_10] : memref<16x32xf32, #tpu.memory_space<vmem>>, vector<16x32xf32>
    %c0_11 = arith.constant 0 : index
    %c0_12 = arith.constant 0 : index
    %c0_13 = arith.constant 0 : index
    %6 = vector.load %arg7[%c0_11, %c0_12, %c0_13] : memref<2x32x96xf32, #tpu.memory_space<vmem>>, vector<1x32x96xf32>
    %7 = vector.shape_cast %6 : vector<1x32x96xf32> to vector<32x96xf32>
    %cst = arith.constant dense<0.000000e+00> : vector<16x96xf32>
    %8 = tpu.matmul %5, %7, %cst {dimension_numbers = #tpu.dot_dimension_numbers<[1], [0], [0], [1], [0, 0, 1, 1], [], []>} : vector<16x32xf32>, vector<32x96xf32>, vector<16x96xf32> -> vector<16x96xf32>
    %c0_14 = arith.constant 0 : index
    %c0_15 = arith.constant 0 : index
    %c0_16 = arith.constant 0 : index
    %9 = vector.load %arg1[%c0_14, %c0_15, %c0_16] : memref<2x16x96xf32, #tpu.memory_space<vmem>>, vector<1x16x96xf32>
    %10 = vector.shape_cast %9 : vector<1x16x96xf32> to vector<16x96xf32>
    %11 = arith.addf %8, %10 : vector<16x96xf32>
    %12 = vector.extract_strided_slice %11 {offsets = [0, 0], sizes = [16, 32], strides = [1, 1]} : vector<16x96xf32> to vector<16x32xf32>
    %13 = vector.extract_strided_slice %11 {offsets = [0, 32], sizes = [16, 32], strides = [1, 1]} : vector<16x96xf32> to vector<16x32xf32>
    %14 = vector.extract_strided_slice %11 {offsets = [0, 64], sizes = [16, 32], strides = [1, 1]} : vector<16x96xf32> to vector<16x32xf32>
    %cst_17 = arith.constant dense<0.000000e+00> : vector<64x32xf32>
    %15 = tpu.matmul %0, %13, %cst_17 {dimension_numbers = #tpu.dot_dimension_numbers<[1], [0], [0], [1], [0, 0, 1, 1], [], []>} : vector<64x16xf32>, vector<16x32xf32>, vector<64x32xf32> -> vector<64x32xf32>
    %16 = arith.mulf %15, %1 : vector<64x32xf32>
    %cst_18 = arith.constant dense<0.000000e+00> : vector<64x32xf32>
    %17 = tpu.matmul %0, %14, %cst_18 {dimension_numbers = #tpu.dot_dimension_numbers<[1], [0], [0], [1], [0, 0, 1, 1], [], []>} : vector<64x16xf32>, vector<16x32xf32>, vector<64x32xf32> -> vector<64x32xf32>
    %18 = arith.mulf %17, %1 : vector<64x32xf32>
    "tpu.trace_start"() <{level = 10 : i32, message = "qe,ce->qc"}> : () -> ()
    %cst_19 = arith.constant dense<0.000000e+00> : vector<16x64xf32>
    %19 = tpu.matmul %12, %16, %cst_19 {dimension_numbers = #tpu.dot_dimension_numbers<[1], [1], [0], [0], [0, 0, 1, 0], [], []>} : vector<16x32xf32>, vector<64x32xf32>, vector<16x64xf32> -> vector<16x64xf32>
    "tpu.trace_stop"() : () -> ()
    %20 = arith.addf %19, %2 : vector<16x64xf32>
    %cst_20 = arith.constant dense<0xFF800000> : vector<16xf32>
    %21 = vector.multi_reduction <maximumf>, %20, %cst_20 [1] : vector<16x64xf32> to vector<16xf32>
    %22 = vector.shape_cast %21 : vector<16xf32> to vector<16x1xf32>
    %23 = vector.broadcast %22 : vector<16x1xf32> to vector<16x64xf32>
    %24 = arith.subf %20, %23 : vector<16x64xf32>
    %25 = math.exp %24 : vector<16x64xf32>
    %cst_21 = arith.constant dense<0.000000e+00> : vector<16x64xf32>
    %26 = tpu.matmul %25, %3, %cst_21 {dimension_numbers = #tpu.dot_dimension_numbers<[1], [0], [0], [1], [0, 0, 1, 1], [], []>} : vector<16x64xf32>, vector<64x64xf32>, vector<16x64xf32> -> vector<16x64xf32>
    %27 = arith.divf %25, %26 : vector<16x64xf32>
    %cst_22 = arith.constant dense<0.000000e+00> : vector<16x32xf32>
    %28 = tpu.matmul %27, %18, %cst_22 {dimension_numbers = #tpu.dot_dimension_numbers<[1], [0], [0], [1], [0, 0, 1, 1], [], []>} : vector<16x64xf32>, vector<64x32xf32>, vector<16x32xf32> -> vector<16x32xf32>
    %c0_23 = arith.constant 0 : index
    %c0_24 = arith.constant 0 : index
    %c0_25 = arith.constant 0 : index
    %29 = vector.load %arg8[%c0_23, %c0_24, %c0_25] : memref<2x32x32xf32, #tpu.memory_space<vmem>>, vector<1x32x32xf32>
    %30 = vector.shape_cast %29 : vector<1x32x32xf32> to vector<32x32xf32>
    %cst_26 = arith.constant dense<0.000000e+00> : vector<16x32xf32>
    %31 = tpu.matmul %28, %30, %cst_26 {dimension_numbers = #tpu.dot_dimension_numbers<[1], [0], [0], [1], [0, 0, 1, 1], [], []>} : vector<16x32xf32>, vector<32x32xf32>, vector<16x32xf32> -> vector<16x32xf32>
    %c0_27 = arith.constant 0 : index
    %c0_28 = arith.constant 0 : index
    %c0_29 = arith.constant 0 : index
    %32 = vector.load %arg9[%c0_27, %c0_28, %c0_29] : memref<2x1x32xf32, #tpu.memory_space<vmem>>, vector<1x1x32xf32>
    %33 = vector.shape_cast %32 : vector<1x1x32xf32> to vector<1x32xf32>
    %34 = vector.broadcast %33 : vector<1x32xf32> to vector<16x32xf32>
    %35 = arith.addf %31, %34 : vector<16x32xf32>
    %36 = arith.addf %5, %35 : vector<16x32xf32>
    %c0_30 = arith.constant 0 : index
    %c0_31 = arith.constant 0 : index
    %c0_32 = arith.constant 0 : index
    %37 = vector.load %arg14[%c0_30, %c0_31, %c0_32] : memref<2x1x32xf32, #tpu.memory_space<vmem>>, vector<1x1x32xf32>
    %38 = vector.shape_cast %37 : vector<1x1x32xf32> to vector<1x32xf32>
    %c0_33 = arith.constant 0 : index
    %c0_34 = arith.constant 0 : index
    %c0_35 = arith.constant 0 : index
    %39 = vector.load %arg15[%c0_33, %c0_34, %c0_35] : memref<2x1x32xf32, #tpu.memory_space<vmem>>, vector<1x1x32xf32>
    %40 = vector.shape_cast %39 : vector<1x1x32xf32> to vector<1x32xf32>
    %cst_36 = arith.constant dense<0.000000e+00> : vector<16x32xf32>
    %41 = tpu.matmul %36, %4, %cst_36 {dimension_numbers = #tpu.dot_dimension_numbers<[1], [0], [0], [1], [0, 0, 1, 1], [], []>} : vector<16x32xf32>, vector<32x32xf32>, vector<16x32xf32> -> vector<16x32xf32>
    %42 = arith.mulf %36, %36 : vector<16x32xf32>
    %cst_37 = arith.constant dense<0.000000e+00> : vector<16x32xf32>
    %43 = tpu.matmul %42, %4, %cst_37 {dimension_numbers = #tpu.dot_dimension_numbers<[1], [0], [0], [1], [0, 0, 1, 1], [], []>} : vector<16x32xf32>, vector<32x32xf32>, vector<16x32xf32> -> vector<16x32xf32>
    %44 = arith.mulf %41, %41 : vector<16x32xf32>
    %45 = arith.subf %43, %44 : vector<16x32xf32>
    %46 = arith.subf %36, %41 : vector<16x32xf32>
    %cst_38 = arith.constant 9.99999974E-6 : f32
    %47 = vector.broadcast %cst_38 : f32 to vector<16x32xf32>
    %48 = arith.addf %45, %47 : vector<16x32xf32>
    %49 = math.rsqrt %48 : vector<16x32xf32>
    %50 = arith.mulf %46, %49 : vector<16x32xf32>
    %51 = vector.broadcast %38 : vector<1x32xf32> to vector<16x32xf32>
    %52 = arith.mulf %50, %51 : vector<16x32xf32>
    %53 = vector.broadcast %40 : vector<1x32xf32> to vector<16x32xf32>
    %54 = arith.addf %52, %53 : vector<16x32xf32>
    %c0_39 = arith.constant 0 : index
    %c0_40 = arith.constant 0 : index
    %c0_41 = arith.constant 0 : index
    %55 = vector.load %arg10[%c0_39, %c0_40, %c0_41] : memref<2x32x64xf32, #tpu.memory_space<vmem>>, vector<1x32x64xf32>
    %56 = vector.shape_cast %55 : vector<1x32x64xf32> to vector<32x64xf32>
    %cst_42 = arith.constant dense<0.000000e+00> : vector<16x64xf32>
    %57 = tpu.matmul %54, %56, %cst_42 {dimension_numbers = #tpu.dot_dimension_numbers<[1], [0], [0], [1], [0, 0, 1, 1], [], []>} : vector<16x32xf32>, vector<32x64xf32>, vector<16x64xf32> -> vector<16x64xf32>
    %c0_43 = arith.constant 0 : index
    %c0_44 = arith.constant 0 : index
    %c0_45 = arith.constant 0 : index
    %58 = vector.load %arg11[%c0_43, %c0_44, %c0_45] : memref<2x1x64xf32, #tpu.memory_space<vmem>>, vector<1x1x64xf32>
    %59 = vector.shape_cast %58 : vector<1x1x64xf32> to vector<1x64xf32>
    %60 = vector.broadcast %59 : vector<1x64xf32> to vector<16x64xf32>
    %61 = arith.addf %57, %60 : vector<16x64xf32>
    %cst_46 = arith.constant 0.000000e+00 : f32
    %62 = vector.broadcast %cst_46 : f32 to vector<16x64xf32>
    %63 = arith.maximumf %61, %62 : vector<16x64xf32>
    %c0_47 = arith.constant 0 : index
    %c0_48 = arith.constant 0 : index
    %c0_49 = arith.constant 0 : index
    %64 = vector.load %arg12[%c0_47, %c0_48, %c0_49] : memref<2x64x32xf32, #tpu.memory_space<vmem>>, vector<1x64x32xf32>
    %65 = vector.shape_cast %64 : vector<1x64x32xf32> to vector<64x32xf32>
    %cst_50 = arith.constant dense<0.000000e+00> : vector<16x32xf32>
    %66 = tpu.matmul %63, %65, %cst_50 {dimension_numbers = #tpu.dot_dimension_numbers<[1], [0], [0], [1], [0, 0, 1, 1], [], []>} : vector<16x64xf32>, vector<64x32xf32>, vector<16x32xf32> -> vector<16x32xf32>
    %c0_51 = arith.constant 0 : index
    %c0_52 = arith.constant 0 : index
    %c0_53 = arith.constant 0 : index
    %67 = vector.load %arg13[%c0_51, %c0_52, %c0_53] : memref<2x1x32xf32, #tpu.memory_space<vmem>>, vector<1x1x32xf32>
    %68 = vector.shape_cast %67 : vector<1x1x32xf32> to vector<1x32xf32>
    %69 = vector.broadcast %68 : vector<1x32xf32> to vector<16x32xf32>
    %70 = arith.addf %66, %69 : vector<16x32xf32>
    %71 = arith.addf %54, %70 : vector<16x32xf32>
    %c0_54 = arith.constant 0 : index
    %c0_55 = arith.constant 0 : index
    %c0_56 = arith.constant 0 : index
    %72 = vector.load %arg16[%c0_54, %c0_55, %c0_56] : memref<2x1x32xf32, #tpu.memory_space<vmem>>, vector<1x1x32xf32>
    %73 = vector.shape_cast %72 : vector<1x1x32xf32> to vector<1x32xf32>
    %c0_57 = arith.constant 0 : index
    %c0_58 = arith.constant 0 : index
    %c0_59 = arith.constant 0 : index
    %74 = vector.load %arg17[%c0_57, %c0_58, %c0_59] : memref<2x1x32xf32, #tpu.memory_space<vmem>>, vector<1x1x32xf32>
    %75 = vector.shape_cast %74 : vector<1x1x32xf32> to vector<1x32xf32>
    %cst_60 = arith.constant dense<0.000000e+00> : vector<16x32xf32>
    %76 = tpu.matmul %71, %4, %cst_60 {dimension_numbers = #tpu.dot_dimension_numbers<[1], [0], [0], [1], [0, 0, 1, 1], [], []>} : vector<16x32xf32>, vector<32x32xf32>, vector<16x32xf32> -> vector<16x32xf32>
    %77 = arith.mulf %71, %71 : vector<16x32xf32>
    %cst_61 = arith.constant dense<0.000000e+00> : vector<16x32xf32>
    %78 = tpu.matmul %77, %4, %cst_61 {dimension_numbers = #tpu.dot_dimension_numbers<[1], [0], [0], [1], [0, 0, 1, 1], [], []>} : vector<16x32xf32>, vector<32x32xf32>, vector<16x32xf32> -> vector<16x32xf32>
    %79 = arith.mulf %76, %76 : vector<16x32xf32>
    %80 = arith.subf %78, %79 : vector<16x32xf32>
    %81 = arith.subf %71, %76 : vector<16x32xf32>
    %cst_62 = arith.constant 9.99999974E-6 : f32
    %82 = vector.broadcast %cst_62 : f32 to vector<16x32xf32>
    %83 = arith.addf %80, %82 : vector<16x32xf32>
    %84 = math.rsqrt %83 : vector<16x32xf32>
    %85 = arith.mulf %81, %84 : vector<16x32xf32>
    %86 = vector.broadcast %73 : vector<1x32xf32> to vector<16x32xf32>
    %87 = arith.mulf %85, %86 : vector<16x32xf32>
    %88 = vector.broadcast %75 : vector<1x32xf32> to vector<16x32xf32>
    %89 = arith.addf %87, %88 : vector<16x32xf32>
    %c1 = arith.constant 1 : index
    %c0_63 = arith.constant 0 : index
    %c0_64 = arith.constant 0 : index
    %90 = vector.load %arg7[%c1, %c0_63, %c0_64] : memref<2x32x96xf32, #tpu.memory_space<vmem>>, vector<1x32x96xf32>
    %91 = vector.shape_cast %90 : vector<1x32x96xf32> to vector<32x96xf32>
    %cst_65 = arith.constant dense<0.000000e+00> : vector<16x96xf32>
    %92 = tpu.matmul %89, %91, %cst_65 {dimension_numbers = #tpu.dot_dimension_numbers<[1], [0], [0], [1], [0, 0, 1, 1], [], []>} : vector<16x32xf32>, vector<32x96xf32>, vector<16x96xf32> -> vector<16x96xf32>
    %c1_66 = arith.constant 1 : index
    %c0_67 = arith.constant 0 : index
    %c0_68 = arith.constant 0 : index
    %93 = vector.load %arg1[%c1_66, %c0_67, %c0_68] : memref<2x16x96xf32, #tpu.memory_space<vmem>>, vector<1x16x96xf32>
    %94 = vector.shape_cast %93 : vector<1x16x96xf32> to vector<16x96xf32>
    %95 = arith.addf %92, %94 : vector<16x96xf32>
    %96 = vector.extract_strided_slice %95 {offsets = [0, 0], sizes = [16, 32], strides = [1, 1]} : vector<16x96xf32> to vector<16x32xf32>
    %97 = vector.extract_strided_slice %95 {offsets = [0, 32], sizes = [16, 32], strides = [1, 1]} : vector<16x96xf32> to vector<16x32xf32>
    %98 = vector.extract_strided_slice %95 {offsets = [0, 64], sizes = [16, 32], strides = [1, 1]} : vector<16x96xf32> to vector<16x32xf32>
    %cst_69 = arith.constant dense<0.000000e+00> : vector<64x32xf32>
    %99 = tpu.matmul %0, %97, %cst_69 {dimension_numbers = #tpu.dot_dimension_numbers<[1], [0], [0], [1], [0, 0, 1, 1], [], []>} : vector<64x16xf32>, vector<16x32xf32>, vector<64x32xf32> -> vector<64x32xf32>
    %100 = arith.mulf %99, %1 : vector<64x32xf32>
    %cst_70 = arith.constant dense<0.000000e+00> : vector<64x32xf32>
    %101 = tpu.matmul %0, %98, %cst_70 {dimension_numbers = #tpu.dot_dimension_numbers<[1], [0], [0], [1], [0, 0, 1, 1], [], []>} : vector<64x16xf32>, vector<16x32xf32>, vector<64x32xf32> -> vector<64x32xf32>
    %102 = arith.mulf %101, %1 : vector<64x32xf32>
    "tpu.trace_start"() <{level = 10 : i32, message = "qe,ce->qc"}> : () -> ()
    %cst_71 = arith.constant dense<0.000000e+00> : vector<16x64xf32>
    %103 = tpu.matmul %96, %100, %cst_71 {dimension_numbers = #tpu.dot_dimension_numbers<[1], [1], [0], [0], [0, 0, 1, 0], [], []>} : vector<16x32xf32>, vector<64x32xf32>, vector<16x64xf32> -> vector<16x64xf32>
    "tpu.trace_stop"() : () -> ()
    %104 = arith.addf %103, %2 : vector<16x64xf32>
    %cst_72 = arith.constant dense<0xFF800000> : vector<16xf32>
    %105 = vector.multi_reduction <maximumf>, %104, %cst_72 [1] : vector<16x64xf32> to vector<16xf32>
    %106 = vector.shape_cast %105 : vector<16xf32> to vector<16x1xf32>
    %107 = vector.broadcast %106 : vector<16x1xf32> to vector<16x64xf32>
    %108 = arith.subf %104, %107 : vector<16x64xf32>
    %109 = math.exp %108 : vector<16x64xf32>
    %cst_73 = arith.constant dense<0.000000e+00> : vector<16x64xf32>
    %110 = tpu.matmul %109, %3, %cst_73 {dimension_numbers = #tpu.dot_dimension_numbers<[1], [0], [0], [1], [0, 0, 1, 1], [], []>} : vector<16x64xf32>, vector<64x64xf32>, vector<16x64xf32> -> vector<16x64xf32>
    %111 = arith.divf %109, %110 : vector<16x64xf32>
    %cst_74 = arith.constant dense<0.000000e+00> : vector<16x32xf32>
    %112 = tpu.matmul %111, %102, %cst_74 {dimension_numbers = #tpu.dot_dimension_numbers<[1], [0], [0], [1], [0, 0, 1, 1], [], []>} : vector<16x64xf32>, vector<64x32xf32>, vector<16x32xf32> -> vector<16x32xf32>
    %c1_75 = arith.constant 1 : index
    %c0_76 = arith.constant 0 : index
    %c0_77 = arith.constant 0 : index
    %113 = vector.load %arg8[%c1_75, %c0_76, %c0_77] : memref<2x32x32xf32, #tpu.memory_space<vmem>>, vector<1x32x32xf32>
    %114 = vector.shape_cast %113 : vector<1x32x32xf32> to vector<32x32xf32>
    %cst_78 = arith.constant dense<0.000000e+00> : vector<16x32xf32>
    %115 = tpu.matmul %112, %114, %cst_78 {dimension_numbers = #tpu.dot_dimension_numbers<[1], [0], [0], [1], [0, 0, 1, 1], [], []>} : vector<16x32xf32>, vector<32x32xf32>, vector<16x32xf32> -> vector<16x32xf32>
    %c1_79 = arith.constant 1 : index
    %c0_80 = arith.constant 0 : index
    %c0_81 = arith.constant 0 : index
    %116 = vector.load %arg9[%c1_79, %c0_80, %c0_81] : memref<2x1x32xf32, #tpu.memory_space<vmem>>, vector<1x1x32xf32>
    %117 = vector.shape_cast %116 : vector<1x1x32xf32> to vector<1x32xf32>
    %118 = vector.broadcast %117 : vector<1x32xf32> to vector<16x32xf32>
    %119 = arith.addf %115, %118 : vector<16x32xf32>
    %120 = arith.addf %89, %119 : vector<16x32xf32>
    %c1_82 = arith.constant 1 : index
    %c0_83 = arith.constant 0 : index
    %c0_84 = arith.constant 0 : index
    %121 = vector.load %arg14[%c1_82, %c0_83, %c0_84] : memref<2x1x32xf32, #tpu.memory_space<vmem>>, vector<1x1x32xf32>
    %122 = vector.shape_cast %121 : vector<1x1x32xf32> to vector<1x32xf32>
    %c1_85 = arith.constant 1 : index
    %c0_86 = arith.constant 0 : index
    %c0_87 = arith.constant 0 : index
    %123 = vector.load %arg15[%c1_85, %c0_86, %c0_87] : memref<2x1x32xf32, #tpu.memory_space<vmem>>, vector<1x1x32xf32>
    %124 = vector.shape_cast %123 : vector<1x1x32xf32> to vector<1x32xf32>
    %cst_88 = arith.constant dense<0.000000e+00> : vector<16x32xf32>
    %125 = tpu.matmul %120, %4, %cst_88 {dimension_numbers = #tpu.dot_dimension_numbers<[1], [0], [0], [1], [0, 0, 1, 1], [], []>} : vector<16x32xf32>, vector<32x32xf32>, vector<16x32xf32> -> vector<16x32xf32>
    %126 = arith.mulf %120, %120 : vector<16x32xf32>
    %cst_89 = arith.constant dense<0.000000e+00> : vector<16x32xf32>
    %127 = tpu.matmul %126, %4, %cst_89 {dimension_numbers = #tpu.dot_dimension_numbers<[1], [0], [0], [1], [0, 0, 1, 1], [], []>} : vector<16x32xf32>, vector<32x32xf32>, vector<16x32xf32> -> vector<16x32xf32>
    %128 = arith.mulf %125, %125 : vector<16x32xf32>
    %129 = arith.subf %127, %128 : vector<16x32xf32>
    %130 = arith.subf %120, %125 : vector<16x32xf32>
    %cst_90 = arith.constant 9.99999974E-6 : f32
    %131 = vector.broadcast %cst_90 : f32 to vector<16x32xf32>
    %132 = arith.addf %129, %131 : vector<16x32xf32>
    %133 = math.rsqrt %132 : vector<16x32xf32>
    %134 = arith.mulf %130, %133 : vector<16x32xf32>
    %135 = vector.broadcast %122 : vector<1x32xf32> to vector<16x32xf32>
    %136 = arith.mulf %134, %135 : vector<16x32xf32>
    %137 = vector.broadcast %124 : vector<1x32xf32> to vector<16x32xf32>
    %138 = arith.addf %136, %137 : vector<16x32xf32>
    %c1_91 = arith.constant 1 : index
    %c0_92 = arith.constant 0 : index
    %c0_93 = arith.constant 0 : index
    %139 = vector.load %arg10[%c1_91, %c0_92, %c0_93] : memref<2x32x64xf32, #tpu.memory_space<vmem>>, vector<1x32x64xf32>
    %140 = vector.shape_cast %139 : vector<1x32x64xf32> to vector<32x64xf32>
    %cst_94 = arith.constant dense<0.000000e+00> : vector<16x64xf32>
    %141 = tpu.matmul %138, %140, %cst_94 {dimension_numbers = #tpu.dot_dimension_numbers<[1], [0], [0], [1], [0, 0, 1, 1], [], []>} : vector<16x32xf32>, vector<32x64xf32>, vector<16x64xf32> -> vector<16x64xf32>
    %c1_95 = arith.constant 1 : index
    %c0_96 = arith.constant 0 : index
    %c0_97 = arith.constant 0 : index
    %142 = vector.load %arg11[%c1_95, %c0_96, %c0_97] : memref<2x1x64xf32, #tpu.memory_space<vmem>>, vector<1x1x64xf32>
    %143 = vector.shape_cast %142 : vector<1x1x64xf32> to vector<1x64xf32>
    %144 = vector.broadcast %143 : vector<1x64xf32> to vector<16x64xf32>
    %145 = arith.addf %141, %144 : vector<16x64xf32>
    %cst_98 = arith.constant 0.000000e+00 : f32
    %146 = vector.broadcast %cst_98 : f32 to vector<16x64xf32>
    %147 = arith.maximumf %145, %146 : vector<16x64xf32>
    %c1_99 = arith.constant 1 : index
    %c0_100 = arith.constant 0 : index
    %c0_101 = arith.constant 0 : index
    %148 = vector.load %arg12[%c1_99, %c0_100, %c0_101] : memref<2x64x32xf32, #tpu.memory_space<vmem>>, vector<1x64x32xf32>
    %149 = vector.shape_cast %148 : vector<1x64x32xf32> to vector<64x32xf32>
    %cst_102 = arith.constant dense<0.000000e+00> : vector<16x32xf32>
    %150 = tpu.matmul %147, %149, %cst_102 {dimension_numbers = #tpu.dot_dimension_numbers<[1], [0], [0], [1], [0, 0, 1, 1], [], []>} : vector<16x64xf32>, vector<64x32xf32>, vector<16x32xf32> -> vector<16x32xf32>
    %c1_103 = arith.constant 1 : index
    %c0_104 = arith.constant 0 : index
    %c0_105 = arith.constant 0 : index
    %151 = vector.load %arg13[%c1_103, %c0_104, %c0_105] : memref<2x1x32xf32, #tpu.memory_space<vmem>>, vector<1x1x32xf32>
    %152 = vector.shape_cast %151 : vector<1x1x32xf32> to vector<1x32xf32>
    %153 = vector.broadcast %152 : vector<1x32xf32> to vector<16x32xf32>
    %154 = arith.addf %150, %153 : vector<16x32xf32>
    %155 = arith.addf %138, %154 : vector<16x32xf32>
    %c1_106 = arith.constant 1 : index
    %c0_107 = arith.constant 0 : index
    %c0_108 = arith.constant 0 : index
    %156 = vector.load %arg16[%c1_106, %c0_107, %c0_108] : memref<2x1x32xf32, #tpu.memory_space<vmem>>, vector<1x1x32xf32>
    %157 = vector.shape_cast %156 : vector<1x1x32xf32> to vector<1x32xf32>
    %c1_109 = arith.constant 1 : index
    %c0_110 = arith.constant 0 : index
    %c0_111 = arith.constant 0 : index
    %158 = vector.load %arg17[%c1_109, %c0_110, %c0_111] : memref<2x1x32xf32, #tpu.memory_space<vmem>>, vector<1x1x32xf32>
    %159 = vector.shape_cast %158 : vector<1x1x32xf32> to vector<1x32xf32>
    %cst_112 = arith.constant dense<0.000000e+00> : vector<16x32xf32>
    %160 = tpu.matmul %155, %4, %cst_112 {dimension_numbers = #tpu.dot_dimension_numbers<[1], [0], [0], [1], [0, 0, 1, 1], [], []>} : vector<16x32xf32>, vector<32x32xf32>, vector<16x32xf32> -> vector<16x32xf32>
    %161 = arith.mulf %155, %155 : vector<16x32xf32>
    %cst_113 = arith.constant dense<0.000000e+00> : vector<16x32xf32>
    %162 = tpu.matmul %161, %4, %cst_113 {dimension_numbers = #tpu.dot_dimension_numbers<[1], [0], [0], [1], [0, 0, 1, 1], [], []>} : vector<16x32xf32>, vector<32x32xf32>, vector<16x32xf32> -> vector<16x32xf32>
    %163 = arith.mulf %160, %160 : vector<16x32xf32>
    %164 = arith.subf %162, %163 : vector<16x32xf32>
    %165 = arith.subf %155, %160 : vector<16x32xf32>
    %cst_114 = arith.constant 9.99999974E-6 : f32
    %166 = vector.broadcast %cst_114 : f32 to vector<16x32xf32>
    %167 = arith.addf %164, %166 : vector<16x32xf32>
    %168 = math.rsqrt %167 : vector<16x32xf32>
    %169 = arith.mulf %165, %168 : vector<16x32xf32>
    %170 = vector.broadcast %157 : vector<1x32xf32> to vector<16x32xf32>
    %171 = arith.mulf %169, %170 : vector<16x32xf32>
    %172 = vector.broadcast %159 : vector<1x32xf32> to vector<16x32xf32>
    %173 = arith.addf %171, %172 : vector<16x32xf32>
    %c0_115 = arith.constant 0 : index
    %c0_116 = arith.constant 0 : index
    %174 = vector.load %arg18[%c0_115, %c0_116] : memref<16x32xf32, #tpu.memory_space<vmem>>, vector<16x32xf32>
    tpu.vector_store %arg18[%c0_115, %c0_116], %173 {strides = array<i32>} : memref<16x32xf32, #tpu.memory_space<vmem>>, vector<16x32xf32>,
    return
  }
}

</mosaic_0001>

<llo_original>
// kernel: transformer_encoder.1
$region0: #{transformer_encoder.1}
  #allocation0 [shape = 'u32[]', space=smem, size = 0x4, offset = 0x4, fixed_abs, tag = 'smem constant byte address 0x4 - core index']
  #allocation1 [shape = 'u32[144,128]{1,0:T(1,128)}', space=vmem, size = 0x12000, scoped, tag = 'internal scratch']
  %s0 = inlined_call_operand.vmem [shape: f32[16,32], index: 0, kind: input, shape index: {}]
  %s1 = inlined_call_operand.vmem [shape: f32[2,16,96], index: 1, kind: input, shape index: {}]
  %s2 = inlined_call_operand.vmem [shape: f32[64,16], index: 2, kind: input, shape index: {}]
  %s3 = inlined_call_operand.vmem [shape: f32[64,32], index: 3, kind: input, shape index: {}]
  %s4 = inlined_call_operand.vmem [shape: f32[16,64], index: 4, kind: input, shape index: {}]
  %s5 = inlined_call_operand.vmem [shape: f32[64,64], index: 5, kind: input, shape index: {}]
  %s6 = inlined_call_operand.vmem [shape: f32[32,32], index: 6, kind: input, shape index: {}]
  %s7 = inlined_call_operand.vmem [shape: f32[2,32,96], index: 7, kind: input, shape index: {}]
  %s8 = inlined_call_operand.vmem [shape: f32[2,32,32], index: 8, kind: input, shape index: {}]
  %s9 = inlined_call_operand.vmem [shape: f32[2,1,32], index: 9, kind: input, shape index: {}]
  %s10 = inlined_call_operand.vmem [shape: f32[2,32,64], index: 10, kind: input, shape index: {}]
  %s11 = inlined_call_operand.vmem [shape: f32[2,1,64], index: 11, kind: input, shape index: {}]
  %s12 = inlined_call_operand.vmem [shape: f32[2,64,32], index: 12, kind: input, shape index: {}]
  %s13 = inlined_call_operand.vmem [shape: f32[2,1,32], index: 13, kind: input, shape index: {}]
  %s14 = inlined_call_operand.vmem [shape: f32[2,1,32], index: 14, kind: input, shape index: {}]
  %s15 = inlined_call_operand.vmem [shape: f32[2,1,32], index: 15, kind: input, shape index: {}]
  %s16 = inlined_call_operand.vmem [shape: f32[2,1,32], index: 16, kind: input, shape index: {}]
  %s17 = inlined_call_operand.vmem [shape: f32[2,1,32], index: 17, kind: input, shape index: {}]
  %s18 = inlined_call_operand.hbm [shape: f32[16,32], index: 18, kind: output, shape index: {}]
  %s19 = sld [smem:[#allocation0]]
  $region82: #{transformer_encoder.1} parent=0
    _
  %s21 = ssub.s32 1, %s19
  %s22 = scalar_select 0, %s21, %s19
  $region1: #{transformer_encoder.1} parent=0
    #allocation2 [shape = 'u8[8192]{0}', space=vmem, size = 0x2000, scoped, tag = 'output window, operand 0, single buffered']
    #allocation3 [shape = 's32[1]{0}', space=sflag, size = 0x4, scoped, tag = 'scoped memory for transformer_encoder.1']
    %23 = vsyncpa [#allocation3], 0
    // Predicated region
    $region2: #{transformer_encoder.1} parent=1 // pred_check
      _
    $region3: #{transformer_encoder.1} parent=1 // pred_check_branch
      %25 = sbr.rel (0) target = $region5
    $region4: #{transformer_encoder.1} parent=1 // pred_region
      _
    $region5: #{transformer_encoder.1} parent=1 // pred_fallthru
      _
    // Predicated region
    $region6: #{transformer_encoder.1} parent=1 // pred_check
      _
    $region7: #{transformer_encoder.1} parent=1 // pred_check_branch
      %27 = sbr.rel (0) target = $region9
    $region8: #{transformer_encoder.1} parent=1 // pred_region
      _
    $region9: #{transformer_encoder.1} parent=1 // pred_fallthru
      _
    // Predicated region
    $region10: #{transformer_encoder.1} parent=1 // pred_check
      _
    $region11: #{transformer_encoder.1} parent=1 // pred_check_branch
      %29 = sbr.rel (0) target = $region13
    $region12: #{transformer_encoder.1} parent=1 // pred_region
      _
    $region13: #{transformer_encoder.1} parent=1 // pred_fallthru
      _
    // Predicated region
    $region14: #{transformer_encoder.1} parent=1 // pred_check
      _
    $region15: #{transformer_encoder.1} parent=1 // pred_check_branch
      %31 = sbr.rel (0) target = $region17
    $region16: #{transformer_encoder.1} parent=1 // pred_region
      _
    $region17: #{transformer_encoder.1} parent=1 // pred_fallthru
      _
    // Predicated region
    $region18: #{transformer_encoder.1} parent=1 // pred_check
      _
    $region19: #{transformer_encoder.1} parent=1 // pred_check_branch
      %33 = sbr.rel (0) target = $region21
    $region20: #{transformer_encoder.1} parent=1 // pred_region
      _
    $region21: #{transformer_encoder.1} parent=1 // pred_fallthru
      _
    // Predicated region
    $region22: #{transformer_encoder.1} parent=1 // pred_check
      _
    $region23: #{transformer_encoder.1} parent=1 // pred_check_branch
      %35 = sbr.rel (0) target = $region25
    $region24: #{transformer_encoder.1} parent=1 // pred_region
      _
    $region25: #{transformer_encoder.1} parent=1 // pred_fallthru
      _
    // Predicated region
    $region26: #{transformer_encoder.1} parent=1 // pred_check
      _
    $region27: #{transformer_encoder.1} parent=1 // pred_check_branch
      %37 = sbr.rel (0) target = $region29
    $region28: #{transformer_encoder.1} parent=1 // pred_region
      _
    $region29: #{transformer_encoder.1} parent=1 // pred_fallthru
      _
    // Predicated region
    $region30: #{transformer_encoder.1} parent=1 // pred_check
      _
    $region31: #{transformer_encoder.1} parent=1 // pred_check_branch
      %39 = sbr.rel (0) target = $region33
    $region32: #{transformer_encoder.1} parent=1 // pred_region
      _
    $region33: #{transformer_encoder.1} parent=1 // pred_fallthru
      _
    // Predicated region
    $region34: #{transformer_encoder.1} parent=1 // pred_check
      _
    $region35: #{transformer_encoder.1} parent=1 // pred_check_branch
      %41 = sbr.rel (0) target = $region37
    $region36: #{transformer_encoder.1} parent=1 // pred_region
      _
    $region37: #{transformer_encoder.1} parent=1 // pred_fallthru
      _
    // Predicated region
    $region38: #{transformer_encoder.1} parent=1 // pred_check
      _
    $region39: #{transformer_encoder.1} parent=1 // pred_check_branch
      %43 = sbr.rel (0) target = $region41
    $region40: #{transformer_encoder.1} parent=1 // pred_region
      _
    $region41: #{transformer_encoder.1} parent=1 // pred_fallthru
      _
    // Predicated region
    $region42: #{transformer_encoder.1} parent=1 // pred_check
      _
    $region43: #{transformer_encoder.1} parent=1 // pred_check_branch
      %45 = sbr.rel (0) target = $region45
    $region44: #{transformer_encoder.1} parent=1 // pred_region
      _
    $region45: #{transformer_encoder.1} parent=1 // pred_fallthru
      _
    // Predicated region
    $region46: #{transformer_encoder.1} parent=1 // pred_check
      _
    $region47: #{transformer_encoder.1} parent=1 // pred_check_branch
      %47 = sbr.rel (0) target = $region49
    $region48: #{transformer_encoder.1} parent=1 // pred_region
      _
    $region49: #{transformer_encoder.1} parent=1 // pred_fallthru
      _
    // Predicated region
    $region50: #{transformer_encoder.1} parent=1 // pred_check
      _
    $region51: #{transformer_encoder.1} parent=1 // pred_check_branch
      %49 = sbr.rel (0) target = $region53
    $region52: #{transformer_encoder.1} parent=1 // pred_region
      _
    $region53: #{transformer_encoder.1} parent=1 // pred_fallthru
      _
    // Predicated region
    $region54: #{transformer_encoder.1} parent=1 // pred_check
      _
    $region55: #{transformer_encoder.1} parent=1 // pred_check_branch
      %51 = sbr.rel (0) target = $region57
    $region56: #{transformer_encoder.1} parent=1 // pred_region
      _
    $region57: #{transformer_encoder.1} parent=1 // pred_fallthru
      _
    // Predicated region
    $region58: #{transformer_encoder.1} parent=1 // pred_check
      _
    $region59: #{transformer_encoder.1} parent=1 // pred_check_branch
      %53 = sbr.rel (0) target = $region61
    $region60: #{transformer_encoder.1} parent=1 // pred_region
      _
    $region61: #{transformer_encoder.1} parent=1 // pred_fallthru
      _
    // Predicated region
    $region62: #{transformer_encoder.1} parent=1 // pred_check
      _
    $region63: #{transformer_encoder.1} parent=1 // pred_check_branch
      %55 = sbr.rel (0) target = $region65
    $region64: #{transformer_encoder.1} parent=1 // pred_region
      _
    $region65: #{transformer_encoder.1} parent=1 // pred_fallthru
      _
    // Predicated region
    $region66: #{transformer_encoder.1} parent=1 // pred_check
      _
    $region67: #{transformer_encoder.1} parent=1 // pred_check_branch
      %57 = sbr.rel (0) target = $region69
    $region68: #{transformer_encoder.1} parent=1 // pred_region
      _
    $region69: #{transformer_encoder.1} parent=1 // pred_fallthru
      _
    // Predicated region
    $region70: #{transformer_encoder.1} parent=1 // pred_check
      _
    $region71: #{transformer_encoder.1} parent=1 // pred_check_branch
      %59 = sbr.rel (0) target = $region73
    $region72: #{transformer_encoder.1} parent=1 // pred_region
      _
    $region73: #{transformer_encoder.1} parent=1 // pred_fallthru
      _
    %v60 = vld [vmem:[%s2] sm:$0xff]
    %v61 = vld [vmem:[%s2 + $0x8] sm:$0xff]
    %v62 = vld [vmem:[%s2 + $0x10] sm:$0xff]
    %v63 = vld [vmem:[%s2 + $0x18] sm:$0xff]
    %v64 = vld [vmem:[%s2 + $0x20] sm:$0xff]
    %v65 = vld [vmem:[%s2 + $0x28] sm:$0xff]
    %v66 = vld [vmem:[%s2 + $0x30] sm:$0xff]
    %v67 = vld [vmem:[%s2 + $0x38] sm:$0xff]
    %v68 = vld [vmem:[%s3] sm:$0xff]
    %v69 = vld [vmem:[%s3 + $0x8] sm:$0xff]
    %v70 = vld [vmem:[%s3 + $0x10] sm:$0xff]
    %v71 = vld [vmem:[%s3 + $0x18] sm:$0xff]
    %v72 = vld [vmem:[%s3 + $0x20] sm:$0xff]
    %v73 = vld [vmem:[%s3 + $0x28] sm:$0xff]
    %v74 = vld [vmem:[%s3 + $0x30] sm:$0xff]
    %v75 = vld [vmem:[%s3 + $0x38] sm:$0xff]
    %v76 = vld [vmem:[%s4] sm:$0xff]
    %v77 = vld [vmem:[%s4 + $0x8] sm:$0xff]
    %v78 = vld [vmem:[%s5] sm:$0xff]
    %v79 = vld [vmem:[%s5 + $0x8] sm:$0xff]
    %v80 = vld [vmem:[%s5 + $0x10] sm:$0xff]
    %v81 = vld [vmem:[%s5 + $0x18] sm:$0xff]
    %v82 = vld [vmem:[%s5 + $0x20] sm:$0xff]
    %v83 = vld [vmem:[%s5 + $0x28] sm:$0xff]
    %v84 = vld [vmem:[%s5 + $0x30] sm:$0xff]
    %v85 = vld [vmem:[%s5 + $0x38] sm:$0xff]
    %v86 = vld [vmem:[%s6] sm:$0xff]
    %v87 = vld [vmem:[%s6 + $0x8] sm:$0xff]
    %v88 = vld [vmem:[%s6 + $0x10] sm:$0xff]
    %v89 = vld [vmem:[%s6 + $0x18] sm:$0xff]
    %v90 = vld [vmem:[%s0] sm:$0xff]
    %v91 = vld [vmem:[%s0 + $0x8] sm:$0xff]
    %v92 = vld [vmem:[%s7] sm:$0xff]
    %v93 = vld [vmem:[%s7 + $0x8] sm:$0xff]
    %v94 = vld [vmem:[%s7 + $0x10] sm:$0xff]
    %v95 = vld [vmem:[%s7 + $0x18] sm:$0xff]
    %v96 = vld [vmem:[%s1] sm:$0xff]
    %v97 = vld [vmem:[%s1 + $0x8] sm:$0xff]
    %vm98 = vcmask 261120
    %v100 = vsel %vm98, %v90, 0
    %v103 = vsel %vm98, %v91, 0
    %105 = vmatprep.subr.mxu0 0.0
    %106 = vmatpush1.msra.mxu0 %v92
    %107 = vmatprep.subr.mxu0 0.0
    %108 = vmatpush1.msra.mxu0 %v93
    %109 = vmatprep.subr.mxu0 0.0
    %110 = vmatpush1.msra.mxu0 %v94
    %111 = vmatprep.subr.mxu0 0.0
    %112 = vmatpush1.msra.mxu0 %v95
    %113 = vmatprep.subr.mxu0 0.0
    %114 = vmatpush1.msra.mxu0 0.0
    %115 = vmatprep.subr.mxu0 0.0
    %116 = vmatpush1.msra.mxu0 0.0
    %117 = vmatprep.subr.mxu0 0.0
    %118 = vmatpush1.msra.mxu0 0.0
    %119 = vmatprep.subr.mxu0 0.0
    %120 = vmatpush1.msra.mxu0 0.0
    %121 = vmatprep.subr.mxu0 0.0
    %122 = vmatpush1.msra.mxu0 0.0
    %123 = vmatprep.subr.mxu0 0.0
    %124 = vmatpush1.msra.mxu0 0.0
    %125 = vmatprep.subr.mxu0 0.0
    %126 = vmatpush1.msra.mxu0 0.0
    %127 = vmatprep.subr.mxu0 0.0
    %128 = vmatpush1.msra.mxu0 0.0
    %129 = vmatprep.subr.mxu0 0.0
    %130 = vmatpush1.msra.mxu0 0.0
    %131 = vmatprep.subr.mxu0 0.0
    %132 = vmatpush1.msra.mxu0 0.0
    %133 = vmatprep.subr.mxu0 0.0
    %134 = vmatpush1.msra.mxu0 0.0
    %135 = vmatprep.subr.mxu0 0.0
    %136 = vmatpush1.msra.mxu0 0.0
    %137 = vmatprep.subr.mxu0 0.0
    %138 = vmatpush1.msra.mxu0 0.0
    %139 = vmatprep.subr.mxu0 0.0
    %140 = vmatpush1.msra.mxu0 0.0
    %141 = vmatprep.subr.mxu0 0.0
    %142 = vmatpush1.msra.mxu0 0.0
    %143 = vmatprep.subr.mxu0 0.0
    %144 = vmatpush1.msra.mxu0 0.0
    %145 = vmatprep.subr.mxu0 0.0
    %146 = vmatpush1.msra.mxu0 0.0
    %147 = vmatprep.subr.mxu0 0.0
    %148 = vmatpush1.msra.mxu0 0.0
    %149 = vmatprep.subr.mxu0 0.0
    %150 = vmatpush1.msra.mxu0 0.0
    %151 = vmatprep.subr.mxu0 0.0
    %152 = vmatpush1.msra.mxu0 0.0
    %153 = vmatprep.subr.mxu0 0.0
    %154 = vmatpush1.msra.mxu0 0.0
    %155 = vmatprep.subr.mxu0 0.0
    %156 = vmatpush1.msra.mxu0 0.0
    %157 = vmatprep.subr.mxu0 0.0
    %158 = vmatpush1.msra.mxu0 0.0
    %159 = vmatprep.subr.mxu0 0.0
    %160 = vmatpush1.msra.mxu0 0.0
    %161 = vmatprep.subr.mxu0 0.0
    %162 = vmatpush1.msra.mxu0 0.0
    %163 = vmatprep.subr.mxu0 0.0
    %164 = vmatpush1.msra.mxu0 0.0
    %165 = vmatprep.subr.mxu0 0.0
    %166 = vmatpush1.msra.mxu0 0.0
    %167 = vmatprep.subr.mxu0 0.0
    %168 = vmatpush1.msra.mxu0 0.0
    %169 = vmatprep.mubr.f32.mxu0 0.0
    %170 = vmatmul.mubr.f32.gmra.mrb[0].mxu0 %v100
    %v171 = vpop.f32.mrb[0].mxu0
    %v172 = vadd.f32 %v96, %v171
    %v173 = vpop.f32.mrb[0].mxu0
    %174 = vmatprep.mubr.f32.mxu0 0.0
    %175 = vmatmul.mubr.f32.gmra.mrb[0].mxu0 %v103
    %v176 = vpop.f32.mrb[0].mxu0
    %v177 = vadd.f32 %v97, %v176
    %v178 = vpop.f32.mrb[0].mxu0
    %179 = vdwg.mxu0
    %182 = vrot.lane.b32.xlu0 %v172, 96
    %v183 = vpop.permute.xlu0 %182
    %184 = vrot.lane.b32.xlu0 %v177, 96
    %v185 = vpop.permute.xlu0 %184
    %vm188 = vcmask 130048
    %v190 = vsel %vm188, %v60, 0
    %v193 = vsel %vm188, %v61, 0
    %v196 = vsel %vm188, %v62, 0
    %v199 = vsel %vm188, %v63, 0
    %v202 = vsel %vm188, %v64, 0
    %v205 = vsel %vm188, %v65, 0
    %v208 = vsel %vm188, %v66, 0
    %v211 = vsel %vm188, %v67, 0
    %213 = vmatprep.subr.mxu0 0.0
    %214 = vmatpush1.msra.mxu0 %v183
    %215 = vmatprep.subr.mxu0 0.0
    %216 = vmatpush1.msra.mxu0 %v185
    %217 = vmatprep.subr.mxu0 0.0
    %218 = vmatpush1.msra.mxu0 0.0
    %219 = vmatprep.subr.mxu0 0.0
    %220 = vmatpush1.msra.mxu0 0.0
    %221 = vmatprep.subr.mxu0 0.0
    %222 = vmatpush1.msra.mxu0 0.0
    %223 = vmatprep.subr.mxu0 0.0
    %224 = vmatpush1.msra.mxu0 0.0
    %225 = vmatprep.subr.mxu0 0.0
    %226 = vmatpush1.msra.mxu0 0.0
    %227 = vmatprep.subr.mxu0 0.0
    %228 = vmatpush1.msra.mxu0 0.0
    %229 = vmatprep.subr.mxu0 0.0
    %230 = vmatpush1.msra.mxu0 0.0
    %231 = vmatprep.subr.mxu0 0.0
    %232 = vmatpush1.msra.mxu0 0.0
    %233 = vmatprep.subr.mxu0 0.0
    %234 = vmatpush1.msra.mxu0 0.0
    %235 = vmatprep.subr.mxu0 0.0
    %236 = vmatpush1.msra.mxu0 0.0
    %237 = vmatprep.subr.mxu0 0.0
    %238 = vmatpush1.msra.mxu0 0.0
    %239 = vmatprep.subr.mxu0 0.0
    %240 = vmatpush1.msra.mxu0 0.0
    %241 = vmatprep.subr.mxu0 0.0
    %242 = vmatpush1.msra.mxu0 0.0
    %243 = vmatprep.subr.mxu0 0.0
    %244 = vmatpush1.msra.mxu0 0.0
    %245 = vmatprep.subr.mxu0 0.0
    %246 = vmatpush1.msra.mxu0 0.0
    %247 = vmatprep.subr.mxu0 0.0
    %248 = vmatpush1.msra.mxu0 0.0
    %249 = vmatprep.subr.mxu0 0.0
    %250 = vmatpush1.msra.mxu0 0.0
    %251 = vmatprep.subr.mxu0 0.0
    %252 = vmatpush1.msra.mxu0 0.0
    %253 = vmatprep.subr.mxu0 0.0
    %254 = vmatpush1.msra.mxu0 0.0
    %255 = vmatprep.subr.mxu0 0.0
    %256 = vmatpush1.msra.mxu0 0.0
    %257 = vmatprep.subr.mxu0 0.0
    %258 = vmatpush1.msra.mxu0 0.0
    %259 = vmatprep.subr.mxu0 0.0
    %260 = vmatpush1.msra.mxu0 0.0
    %261 = vmatprep.subr.mxu0 0.0
    %262 = vmatpush1.msra.mxu0 0.0
    %263 = vmatprep.subr.mxu0 0.0
    %264 = vmatpush1.msra.mxu0 0.0
    %265 = vmatprep.subr.mxu0 0.0
    %266 = vmatpush1.msra.mxu0 0.0
    %267 = vmatprep.subr.mxu0 0.0
    %268 = vmatpush1.msra.mxu0 0.0
    %269 = vmatprep.subr.mxu0 0.0
    %270 = vmatpush1.msra.mxu0 0.0
    %271 = vmatprep.subr.mxu0 0.0
    %272 = vmatpush1.msra.mxu0 0.0
    %273 = vmatprep.subr.mxu0 0.0
    %274 = vmatpush1.msra.mxu0 0.0
    %275 = vmatprep.subr.mxu0 0.0
    %276 = vmatpush1.msra.mxu0 0.0
    %277 = vmatprep.mubr.f32.mxu0 0.0
    %278 = vmatmul.mubr.f32.gmra.mrb[0].mxu0 %v190
    %v279 = vpop.f32.mrb[0].mxu0
    %v280 = vadd.f32 0.0, %v279
    %v281 = vpop.f32.mrb[0].mxu0
    %282 = vmatprep.mubr.f32.mxu0 0.0
    %283 = vmatmul.mubr.f32.gmra.mrb[0].mxu0 %v193
    %v284 = vpop.f32.mrb[0].mxu0
    %v285 = vadd.f32 0.0, %v284
    %v286 = vpop.f32.mrb[0].mxu0
    %287 = vmatprep.mubr.f32.mxu0 0.0
    %288 = vmatmul.mubr.f32.gmra.mrb[0].mxu0 %v196
    %v289 = vpop.f32.mrb[0].mxu0
    %v290 = vadd.f32 0.0, %v289
    %v291 = vpop.f32.mrb[0].mxu0
    %292 = vmatprep.mubr.f32.mxu0 0.0
    %293 = vmatmul.mubr.f32.gmra.mrb[0].mxu0 %v199
    %v294 = vpop.f32.mrb[0].mxu0
    %v295 = vadd.f32 0.0, %v294
    %v296 = vpop.f32.mrb[0].mxu0
    %297 = vmatprep.mubr.f32.mxu0 0.0
    %298 = vmatmul.mubr.f32.gmra.mrb[0].mxu0 %v202
    %v299 = vpop.f32.mrb[0].mxu0
    %v300 = vadd.f32 0.0, %v299
    %v301 = vpop.f32.mrb[0].mxu0
    %302 = vmatprep.mubr.f32.mxu0 0.0
    %303 = vmatmul.mubr.f32.gmra.mrb[0].mxu0 %v205
    %v304 = vpop.f32.mrb[0].mxu0
    %v305 = vadd.f32 0.0, %v304
    %v306 = vpop.f32.mrb[0].mxu0
    %307 = vmatprep.mubr.f32.mxu0 0.0
    %308 = vmatmul.mubr.f32.gmra.mrb[0].mxu0 %v208
    %v309 = vpop.f32.mrb[0].mxu0
    %v310 = vadd.f32 0.0, %v309
    %v311 = vpop.f32.mrb[0].mxu0
    %312 = vmatprep.mubr.f32.mxu0 0.0
    %313 = vmatmul.mubr.f32.gmra.mrb[0].mxu0 %v211
    %v314 = vpop.f32.mrb[0].mxu0
    %v315 = vadd.f32 0.0, %v314
    %v316 = vpop.f32.mrb[0].mxu0
    %317 = vdwg.mxu0
    %v318 = vmul.f32 %v280, %v68
    %v319 = vmul.f32 %v285, %v69
    %v320 = vmul.f32 %v290, %v70
    %v321 = vmul.f32 %v295, %v71
    %v322 = vmul.f32 %v300, %v72
    %v323 = vmul.f32 %v305, %v73
    %v324 = vmul.f32 %v310, %v74
    %v325 = vmul.f32 %v315, %v75
    %326 = vrot.lane.b32.xlu0 %v172, 64
    %v327 = vpop.permute.xlu0 %326
    %328 = vrot.lane.b32.xlu0 %v177, 64
    %v329 = vpop.permute.xlu0 %328
    %332 = vmatprep.subr.mxu0 0.0
    %333 = vmatpush1.msra.mxu0 %v327
    %334 = vmatprep.subr.mxu0 0.0
    %335 = vmatpush1.msra.mxu0 %v329
    %336 = vmatprep.subr.mxu0 0.0
    %337 = vmatpush1.msra.mxu0 0.0
    %338 = vmatprep.subr.mxu0 0.0
    %339 = vmatpush1.msra.mxu0 0.0
    %340 = vmatprep.subr.mxu0 0.0
    %341 = vmatpush1.msra.mxu0 0.0
    %342 = vmatprep.subr.mxu0 0.0
    %343 = vmatpush1.msra.mxu0 0.0
    %344 = vmatprep.subr.mxu0 0.0
    %345 = vmatpush1.msra.mxu0 0.0
    %346 = vmatprep.subr.mxu0 0.0
    %347 = vmatpush1.msra.mxu0 0.0
    %348 = vmatprep.subr.mxu0 0.0
    %349 = vmatpush1.msra.mxu0 0.0
    %350 = vmatprep.subr.mxu0 0.0
    %351 = vmatpush1.msra.mxu0 0.0
    %352 = vmatprep.subr.mxu0 0.0
    %353 = vmatpush1.msra.mxu0 0.0
    %354 = vmatprep.subr.mxu0 0.0
    %355 = vmatpush1.msra.mxu0 0.0
    %356 = vmatprep.subr.mxu0 0.0
    %357 = vmatpush1.msra.mxu0 0.0
    %358 = vmatprep.subr.mxu0 0.0
    %359 = vmatpush1.msra.mxu0 0.0
    %360 = vmatprep.subr.mxu0 0.0
    %361 = vmatpush1.msra.mxu0 0.0
    %362 = vmatprep.subr.mxu0 0.0
    %363 = vmatpush1.msra.mxu0 0.0
    %364 = vmatprep.subr.mxu0 0.0
    %365 = vmatpush1.msra.mxu0 0.0
    %366 = vmatprep.subr.mxu0 0.0
    %367 = vmatpush1.msra.mxu0 0.0
    %368 = vmatprep.subr.mxu0 0.0
    %369 = vmatpush1.msra.mxu0 0.0
    %370 = vmatprep.subr.mxu0 0.0
    %371 = vmatpush1.msra.mxu0 0.0
    %372 = vmatprep.subr.mxu0 0.0
    %373 = vmatpush1.msra.mxu0 0.0
    %374 = vmatprep.subr.mxu0 0.0
    %375 = vmatpush1.msra.mxu0 0.0
    %376 = vmatprep.subr.mxu0 0.0
    %377 = vmatpush1.msra.mxu0 0.0
    %378 = vmatprep.subr.mxu0 0.0
    %379 = vmatpush1.msra.mxu0 0.0
    %380 = vmatprep.subr.mxu0 0.0
    %381 = vmatpush1.msra.mxu0 0.0
    %382 = vmatprep.subr.mxu0 0.0
    %383 = vmatpush1.msra.mxu0 0.0
    %384 = vmatprep.subr.mxu0 0.0
    %385 = vmatpush1.msra.mxu0 0.0
    %386 = vmatprep.subr.mxu0 0.0
    %387 = vmatpush1.msra.mxu0 0.0
    %388 = vmatprep.subr.mxu0 0.0
    %389 = vmatpush1.msra.mxu0 0.0
    %390 = vmatprep.subr.mxu0 0.0
    %391 = vmatpush1.msra.mxu0 0.0
    %392 = vmatprep.subr.mxu0 0.0
    %393 = vmatpush1.msra.mxu0 0.0
    %394 = vmatprep.subr.mxu0 0.0
    %395 = vmatpush1.msra.mxu0 0.0
    %396 = vmatprep.mubr.f32.mxu0 0.0
    %397 = vmatmul.mubr.f32.gmra.mrb[0].mxu0 %v190
    %v398 = vpop.f32.mrb[0].mxu0
    %v399 = vadd.f32 0.0, %v398
    %v400 = vpop.f32.mrb[0].mxu0
    %401 = vmatprep.mubr.f32.mxu0 0.0
    %402 = vmatmul.mubr.f32.gmra.mrb[0].mxu0 %v193
    %v403 = vpop.f32.mrb[0].mxu0
    %v404 = vadd.f32 0.0, %v403
    %v405 = vpop.f32.mrb[0].mxu0
    %406 = vmatprep.mubr.f32.mxu0 0.0
    %407 = vmatmul.mubr.f32.gmra.mrb[0].mxu0 %v196
    %v408 = vpop.f32.mrb[0].mxu0
    %v409 = vadd.f32 0.0, %v408
    %v410 = vpop.f32.mrb[0].mxu0
    %411 = vmatprep.mubr.f32.mxu0 0.0
    %412 = vmatmul.mubr.f32.gmra.mrb[0].mxu0 %v199
    %v413 = vpop.f32.mrb[0].mxu0
    %v414 = vadd.f32 0.0, %v413
    %v415 = vpop.f32.mrb[0].mxu0
    %416 = vmatprep.mubr.f32.mxu0 0.0
    %417 = vmatmul.mubr.f32.gmra.mrb[0].mxu0 %v202
    %v418 = vpop.f32.mrb[0].mxu0
    %v419 = vadd.f32 0.0, %v418
    %v420 = vpop.f32.mrb[0].mxu0
    %421 = vmatprep.mubr.f32.mxu0 0.0
    %422 = vmatmul.mubr.f32.gmra.mrb[0].mxu0 %v205
    %v423 = vpop.f32.mrb[0].mxu0
    %v424 = vadd.f32 0.0, %v423
    %v425 = vpop.f32.mrb[0].mxu0
    %426 = vmatprep.mubr.f32.mxu0 0.0
    %427 = vmatmul.mubr.f32.gmra.mrb[0].mxu0 %v208
    %v428 = vpop.f32.mrb[0].mxu0
    %v429 = vadd.f32 0.0, %v428
    %v430 = vpop.f32.mrb[0].mxu0
    %431 = vmatprep.mubr.f32.mxu0 0.0
    %432 = vmatmul.mubr.f32.gmra.mrb[0].mxu0 %v211
    %v433 = vpop.f32.mrb[0].mxu0
    %v434 = vadd.f32 0.0, %v433
    %v435 = vpop.f32.mrb[0].mxu0
    %436 = vdwg.mxu0
    %v437 = vmul.f32 %v399, %v68
    %v438 = vmul.f32 %v404, %v69
    %v439 = vmul.f32 %v409, %v70
    %v440 = vmul.f32 %v414, %v71
    %v441 = vmul.f32 %v419, %v72
    %v442 = vmul.f32 %v424, %v73
    %v443 = vmul.f32 %v429, %v74
    %v444 = vmul.f32 %v434, %v75
    %v445 = vsel %vm98, %v172, 0
    %v447 = vsel %vm98, %v177, 0
    %v450 = vsel %vm98, %v318, 0
    %v453 = vsel %vm98, %v319, 0
    %v456 = vsel %vm98, %v320, 0
    %v459 = vsel %vm98, %v321, 0
    %v462 = vsel %vm98, %v322, 0
    %v465 = vsel %vm98, %v323, 0
    %v468 = vsel %vm98, %v324, 0
    %v471 = vsel %vm98, %v325, 0
    %473 = vmatprep.subr.mxu0 0.0
    %474 = vmatpush1.xpose.msra.mxu0 %v450
    %475 = vmatprep.subr.mxu0 0.0
    %476 = vmatpush1.xpose.msra.mxu0 %v453
    %477 = vmatprep.subr.mxu0 0.0
    %478 = vmatpush1.xpose.msra.mxu0 %v456
    %479 = vmatprep.subr.mxu0 0.0
    %480 = vmatpush1.xpose.msra.mxu0 %v459
    %481 = vmatprep.subr.mxu0 0.0
    %482 = vmatpush1.xpose.msra.mxu0 %v462
    %483 = vmatprep.subr.mxu0 0.0
    %484 = vmatpush1.xpose.msra.mxu0 %v465
    %485 = vmatprep.subr.mxu0 0.0
    %486 = vmatpush1.xpose.msra.mxu0 %v468
    %487 = vmatprep.subr.mxu0 0.0
    %488 = vmatpush1.xpose.msra.mxu0 %v471
    %489 = vmatprep.subr.mxu0 0.0
    %490 = vmatpush1.xpose.msra.mxu0 0.0
    %491 = vmatprep.subr.mxu0 0.0
    %492 = vmatpush1.xpose.msra.mxu0 0.0
    %493 = vmatprep.subr.mxu0 0.0
    %494 = vmatpush1.xpose.msra.mxu0 0.0
    %495 = vmatprep.subr.mxu0 0.0
    %496 = vmatpush1.xpose.msra.mxu0 0.0
    %497 = vmatprep.subr.mxu0 0.0
    %498 = vmatpush1.xpose.msra.mxu0 0.0
    %499 = vmatprep.subr.mxu0 0.0
    %500 = vmatpush1.xpose.msra.mxu0 0.0
    %501 = vmatprep.subr.mxu0 0.0
    %502 = vmatpush1.xpose.msra.mxu0 0.0
    %503 = vmatprep.subr.mxu0 0.0
    %504 = vmatpush1.xpose.msra.mxu0 0.0
    %505 = vmatprep.subr.mxu0 0.0
    %506 = vmatpush1.xpose.msra.mxu0 0.0
    %507 = vmatprep.subr.mxu0 0.0
    %508 = vmatpush1.xpose.msra.mxu0 0.0
    %509 = vmatprep.subr.mxu0 0.0
    %510 = vmatpush1.xpose.msra.mxu0 0.0
    %511 = vmatprep.subr.mxu0 0.0
    %512 = vmatpush1.xpose.msra.mxu0 0.0
    %513 = vmatprep.subr.mxu0 0.0
    %514 = vmatpush1.xpose.msra.mxu0 0.0
    %515 = vmatprep.subr.mxu0 0.0
    %516 = vmatpush1.xpose.msra.mxu0 0.0
    %517 = vmatprep.subr.mxu0 0.0
    %518 = vmatpush1.xpose.msra.mxu0 0.0
    %519 = vmatprep.subr.mxu0 0.0
    %520 = vmatpush1.xpose.msra.mxu0 0.0
    %521 = vmatprep.subr.mxu0 0.0
    %522 = vmatpush1.xpose.msra.mxu0 0.0
    %523 = vmatprep.subr.mxu0 0.0
    %524 = vmatpush1.xpose.msra.mxu0 0.0
    %525 = vmatprep.subr.mxu0 0.0
    %526 = vmatpush1.xpose.msra.mxu0 0.0
    %527 = vmatprep.subr.mxu0 0.0
    %528 = vmatpush1.xpose.msra.mxu0 0.0
    %529 = vmatprep.subr.mxu0 0.0
    %530 = vmatpush1.xpose.msra.mxu0 0.0
    %531 = vmatprep.subr.mxu0 0.0
    %532 = vmatpush1.xpose.msra.mxu0 0.0
    %533 = vmatprep.subr.mxu0 0.0
    %534 = vmatpush1.xpose.msra.mxu0 0.0
    %535 = vmatprep.subr.mxu0 0.0
    %536 = vmatpush1.xpose.msra.mxu0 0.0
    %537 = vmatprep.mubr.f32.mxu0 0.0
    %538 = vmatmul.mubr.f32.gmra.mrb[0].mxu0 %v445
    %v539 = vpop.f32.mrb[0].mxu0
    %v540 = vadd.f32 %v76, %v539
    %v541 = vpop.f32.mrb[0].mxu0
    %542 = vmatprep.mubr.f32.mxu0 0.0
    %543 = vmatmul.mubr.f32.gmra.mrb[0].mxu0 %v447
    %v544 = vpop.f32.mrb[0].mxu0
    %v545 = vadd.f32 %v77, %v544
    %v546 = vpop.f32.mrb[0].mxu0
    %547 = vdwg.mxu0
    %vm548 = vcmask 523264
    %v549 = vsel %vm548, %v540, -inf
    %550 = vmax.xlane.f32.xlu0 %v549
    %v551 = vpop.xlane.xlu0 %550
    %v552 = vsel %vm548, %v545, -inf
    %553 = vmax.xlane.f32.xlu0 %v552
    %v554 = vpop.xlane.xlu0 %553
    %v555 = vsub.f32 %v540, %v551
    %v556 = vsub.f32 %v545, %v554
    %v557 = vmul.f32 %v555, 1.442695
    %v558 = vpow.pop %v557
    %v559 = vmul.f32 %v556, 1.442695
    %v560 = vpow.pop %v559
    %v562 = vsel %vm548, %v558, 0
    %v565 = vsel %vm548, %v560, 0
    %567 = vmatprep.subr.mxu0 0.0
    %568 = vmatpush1.msra.mxu0 %v78
    %569 = vmatprep.subr.mxu0 0.0
    %570 = vmatpush1.msra.mxu0 %v79
    %571 = vmatprep.subr.mxu0 0.0
    %572 = vmatpush1.msra.mxu0 %v80
    %573 = vmatprep.subr.mxu0 0.0
    %574 = vmatpush1.msra.mxu0 %v81
    %575 = vmatprep.subr.mxu0 0.0
    %576 = vmatpush1.msra.mxu0 %v82
    %577 = vmatprep.subr.mxu0 0.0
    %578 = vmatpush1.msra.mxu0 %v83
    %579 = vmatprep.subr.mxu0 0.0
    %580 = vmatpush1.msra.mxu0 %v84
    %581 = vmatprep.subr.mxu0 0.0
    %582 = vmatpush1.msra.mxu0 %v85
    %583 = vmatprep.subr.mxu0 0.0
    %584 = vmatpush1.msra.mxu0 0.0
    %585 = vmatprep.subr.mxu0 0.0
    %586 = vmatpush1.msra.mxu0 0.0
    %587 = vmatprep.subr.mxu0 0.0
    %588 = vmatpush1.msra.mxu0 0.0
    %589 = vmatprep.subr.mxu0 0.0
    %590 = vmatpush1.msra.mxu0 0.0
    %591 = vmatprep.subr.mxu0 0.0
    %592 = vmatpush1.msra.mxu0 0.0
    %593 = vmatprep.subr.mxu0 0.0
    %594 = vmatpush1.msra.mxu0 0.0
    %595 = vmatprep.subr.mxu0 0.0
    %596 = vmatpush1.msra.mxu0 0.0
    %597 = vmatprep.subr.mxu0 0.0
    %598 = vmatpush1.msra.mxu0 0.0
    %599 = vmatprep.subr.mxu0 0.0
    %600 = vmatpush1.msra.mxu0 0.0
    %601 = vmatprep.subr.mxu0 0.0
    %602 = vmatpush1.msra.mxu0 0.0
    %603 = vmatprep.subr.mxu0 0.0
    %604 = vmatpush1.msra.mxu0 0.0
    %605 = vmatprep.subr.mxu0 0.0
    %606 = vmatpush1.msra.mxu0 0.0
    %607 = vmatprep.subr.mxu0 0.0
    %608 = vmatpush1.msra.mxu0 0.0
    %609 = vmatprep.subr.mxu0 0.0
    %610 = vmatpush1.msra.mxu0 0.0
    %611 = vmatprep.subr.mxu0 0.0
    %612 = vmatpush1.msra.mxu0 0.0
    %613 = vmatprep.subr.mxu0 0.0
    %614 = vmatpush1.msra.mxu0 0.0
    %615 = vmatprep.subr.mxu0 0.0
    %616 = vmatpush1.msra.mxu0 0.0
    %617 = vmatprep.subr.mxu0 0.0
    %618 = vmatpush1.msra.mxu0 0.0
    %619 = vmatprep.subr.mxu0 0.0
    %620 = vmatpush1.msra.mxu0 0.0
    %621 = vmatprep.subr.mxu0 0.0
    %622 = vmatpush1.msra.mxu0 0.0
    %623 = vmatprep.subr.mxu0 0.0
    %624 = vmatpush1.msra.mxu0 0.0
    %625 = vmatprep.subr.mxu0 0.0
    %626 = vmatpush1.msra.mxu0 0.0
    %627 = vmatprep.subr.mxu0 0.0
    %628 = vmatpush1.msra.mxu0 0.0
    %629 = vmatprep.subr.mxu0 0.0
    %630 = vmatpush1.msra.mxu0 0.0
    %631 = vmatprep.mubr.f32.mxu0 0.0
    %632 = vmatmul.mubr.f32.gmra.mrb[0].mxu0 %v562
    %v633 = vpop.f32.mrb[0].mxu0
    %v634 = vadd.f32 0.0, %v633
    %v635 = vpop.f32.mrb[0].mxu0
    %636 = vmatprep.mubr.f32.mxu0 0.0
    %637 = vmatmul.mubr.f32.gmra.mrb[0].mxu0 %v565
    %v638 = vpop.f32.mrb[0].mxu0
    %v639 = vadd.f32 0.0, %v638
    %v640 = vpop.f32.mrb[0].mxu0
    %641 = vdwg.mxu0
    %v642 = vrcp.pop %v634
    %v643 = vmul.f32 %v558, %v642
    %v644 = vrcp.pop %v639
    %v645 = vmul.f32 %v560, %v644
    %v647 = vsel %vm548, %v643, 0
    %v650 = vsel %vm548, %v645, 0
    %652 = vmatprep.subr.mxu0 0.0
    %653 = vmatpush1.msra.mxu0 %v437
    %654 = vmatprep.subr.mxu0 0.0
    %655 = vmatpush1.msra.mxu0 %v438
    %656 = vmatprep.subr.mxu0 0.0
    %657 = vmatpush1.msra.mxu0 %v439
    %658 = vmatprep.subr.mxu0 0.0
    %659 = vmatpush1.msra.mxu0 %v440
    %660 = vmatprep.subr.mxu0 0.0
    %661 = vmatpush1.msra.mxu0 %v441
    %662 = vmatprep.subr.mxu0 0.0
    %663 = vmatpush1.msra.mxu0 %v442
    %664 = vmatprep.subr.mxu0 0.0
    %665 = vmatpush1.msra.mxu0 %v443
    %666 = vmatprep.subr.mxu0 0.0
    %667 = vmatpush1.msra.mxu0 %v444
    %668 = vmatprep.subr.mxu0 0.0
    %669 = vmatpush1.msra.mxu0 0.0
    %670 = vmatprep.subr.mxu0 0.0
    %671 = vmatpush1.msra.mxu0 0.0
    %672 = vmatprep.subr.mxu0 0.0
    %673 = vmatpush1.msra.mxu0 0.0
    %674 = vmatprep.subr.mxu0 0.0
    %675 = vmatpush1.msra.mxu0 0.0
    %676 = vmatprep.subr.mxu0 0.0
    %677 = vmatpush1.msra.mxu0 0.0
    %678 = vmatprep.subr.mxu0 0.0
    %679 = vmatpush1.msra.mxu0 0.0
    %680 = vmatprep.subr.mxu0 0.0
    %681 = vmatpush1.msra.mxu0 0.0
    %682 = vmatprep.subr.mxu0 0.0
    %683 = vmatpush1.msra.mxu0 0.0
    %684 = vmatprep.subr.mxu0 0.0
    %685 = vmatpush1.msra.mxu0 0.0
    %686 = vmatprep.subr.mxu0 0.0
    %687 = vmatpush1.msra.mxu0 0.0
    %688 = vmatprep.subr.mxu0 0.0
    %689 = vmatpush1.msra.mxu0 0.0
    %690 = vmatprep.subr.mxu0 0.0
    %691 = vmatpush1.msra.mxu0 0.0
    %692 = vmatprep.subr.mxu0 0.0
    %693 = vmatpush1.msra.mxu0 0.0
    %694 = vmatprep.subr.mxu0 0.0
    %695 = vmatpush1.msra.mxu0 0.0
    %696 = vmatprep.subr.mxu0 0.0
    %697 = vmatpush1.msra.mxu0 0.0
    %698 = vmatprep.subr.mxu0 0.0
    %699 = vmatpush1.msra.mxu0 0.0
    %700 = vmatprep.subr.mxu0 0.0
    %701 = vmatpush1.msra.mxu0 0.0
    %702 = vmatprep.subr.mxu0 0.0
    %703 = vmatpush1.msra.mxu0 0.0
    %704 = vmatprep.subr.mxu0 0.0
    %705 = vmatpush1.msra.mxu0 0.0
    %706 = vmatprep.subr.mxu0 0.0
    %707 = vmatpush1.msra.mxu0 0.0
    %708 = vmatprep.subr.mxu0 0.0
    %709 = vmatpush1.msra.mxu0 0.0
    %710 = vmatprep.subr.mxu0 0.0
    %711 = vmatpush1.msra.mxu0 0.0
    %712 = vmatprep.subr.mxu0 0.0
    %713 = vmatpush1.msra.mxu0 0.0
    %714 = vmatprep.subr.mxu0 0.0
    %715 = vmatpush1.msra.mxu0 0.0
    %716 = vmatprep.mubr.f32.mxu0 0.0
    %717 = vmatmul.mubr.f32.gmra.mrb[0].mxu0 %v647
    %v718 = vpop.f32.mrb[0].mxu0
    %v719 = vadd.f32 0.0, %v718
    %v720 = vpop.f32.mrb[0].mxu0
    %721 = vmatprep.mubr.f32.mxu0 0.0
    %722 = vmatmul.mubr.f32.gmra.mrb[0].mxu0 %v650
    %v723 = vpop.f32.mrb[0].mxu0
    %v724 = vadd.f32 0.0, %v723
    %v725 = vpop.f32.mrb[0].mxu0
    %726 = vdwg.mxu0
    %v727 = vld [vmem:[%s8] sm:$0xff]
    %v728 = vld [vmem:[%s8 + $0x8] sm:$0xff]
    %v729 = vld [vmem:[%s8 + $0x10] sm:$0xff]
    %v730 = vld [vmem:[%s8 + $0x18] sm:$0xff]
    %v731 = vld [vmem:[%s9] sm:$0x1]
    %v733 = vlaneseq
    %v734 = vshrl.u32 %v733, 7
    %v735 = vsub.s32 0, %v734
    %v736 = vrot.slane %v731, %v735
    %v739 = vsel %vm98, %v719, 0
    %v742 = vsel %vm98, %v724, 0
    %744 = vmatprep.subr.mxu0 0.0
    %745 = vmatpush1.msra.mxu0 %v727
    %746 = vmatprep.subr.mxu0 0.0
    %747 = vmatpush1.msra.mxu0 %v728
    %748 = vmatprep.subr.mxu0 0.0
    %749 = vmatpush1.msra.mxu0 %v729
    %750 = vmatprep.subr.mxu0 0.0
    %751 = vmatpush1.msra.mxu0 %v730
    %752 = vmatprep.subr.mxu0 0.0
    %753 = vmatpush1.msra.mxu0 0.0
    %754 = vmatprep.subr.mxu0 0.0
    %755 = vmatpush1.msra.mxu0 0.0
    %756 = vmatprep.subr.mxu0 0.0
    %757 = vmatpush1.msra.mxu0 0.0
    %758 = vmatprep.subr.mxu0 0.0
    %759 = vmatpush1.msra.mxu0 0.0
    %760 = vmatprep.subr.mxu0 0.0
    %761 = vmatpush1.msra.mxu0 0.0
    %762 = vmatprep.subr.mxu0 0.0
    %763 = vmatpush1.msra.mxu0 0.0
    %764 = vmatprep.subr.mxu0 0.0
    %765 = vmatpush1.msra.mxu0 0.0
    %766 = vmatprep.subr.mxu0 0.0
    %767 = vmatpush1.msra.mxu0 0.0
    %768 = vmatprep.subr.mxu0 0.0
    %769 = vmatpush1.msra.mxu0 0.0
    %770 = vmatprep.subr.mxu0 0.0
    %771 = vmatpush1.msra.mxu0 0.0
    %772 = vmatprep.subr.mxu0 0.0
    %773 = vmatpush1.msra.mxu0 0.0
    %774 = vmatprep.subr.mxu0 0.0
    %775 = vmatpush1.msra.mxu0 0.0
    %776 = vmatprep.subr.mxu0 0.0
    %777 = vmatpush1.msra.mxu0 0.0
    %778 = vmatprep.subr.mxu0 0.0
    %779 = vmatpush1.msra.mxu0 0.0
    %780 = vmatprep.subr.mxu0 0.0
    %781 = vmatpush1.msra.mxu0 0.0
    %782 = vmatprep.subr.mxu0 0.0
    %783 = vmatpush1.msra.mxu0 0.0
    %784 = vmatprep.subr.mxu0 0.0
    %785 = vmatpush1.msra.mxu0 0.0
    %786 = vmatprep.subr.mxu0 0.0
    %787 = vmatpush1.msra.mxu0 0.0
    %788 = vmatprep.subr.mxu0 0.0
    %789 = vmatpush1.msra.mxu0 0.0
    %790 = vmatprep.subr.mxu0 0.0
    %791 = vmatpush1.msra.mxu0 0.0
    %792 = vmatprep.subr.mxu0 0.0
    %793 = vmatpush1.msra.mxu0 0.0
    %794 = vmatprep.subr.mxu0 0.0
    %795 = vmatpush1.msra.mxu0 0.0
    %796 = vmatprep.subr.mxu0 0.0
    %797 = vmatpush1.msra.mxu0 0.0
    %798 = vmatprep.subr.mxu0 0.0
    %799 = vmatpush1.msra.mxu0 0.0
    %800 = vmatprep.subr.mxu0 0.0
    %801 = vmatpush1.msra.mxu0 0.0
    %802 = vmatprep.subr.mxu0 0.0
    %803 = vmatpush1.msra.mxu0 0.0
    %804 = vmatprep.subr.mxu0 0.0
    %805 = vmatpush1.msra.mxu0 0.0
    %806 = vmatprep.subr.mxu0 0.0
    %807 = vmatpush1.msra.mxu0 0.0
    %808 = vmatprep.mubr.f32.mxu0 0.0
    %809 = vmatmul.mubr.f32.gmra.mrb[0].mxu0 %v739
    %v810 = vpop.f32.mrb[0].mxu0
    %v811 = vadd.f32 %v736, %v810
    %v812 = vpop.f32.mrb[0].mxu0
    %813 = vmatprep.mubr.f32.mxu0 0.0
    %814 = vmatmul.mubr.f32.gmra.mrb[0].mxu0 %v742
    %v815 = vpop.f32.mrb[0].mxu0
    %v816 = vadd.f32 %v736, %v815
    %v817 = vpop.f32.mrb[0].mxu0
    %818 = vdwg.mxu0
    %v819 = vadd.f32 %v90, %v811
    %v820 = vadd.f32 %v91, %v816
    %v821 = vld [vmem:[%s14] sm:$0x1]
    %v822 = vld [vmem:[%s15] sm:$0x1]
    %v824 = vsel %vm98, %v819, 0
    %v827 = vsel %vm98, %v820, 0
    %829 = vmatprep.subr.mxu0 0.0
    %830 = vmatpush1.msra.mxu0 %v86
    %831 = vmatprep.subr.mxu0 0.0
    %832 = vmatpush1.msra.mxu0 %v87
    %833 = vmatprep.subr.mxu0 0.0
    %834 = vmatpush1.msra.mxu0 %v88
    %835 = vmatprep.subr.mxu0 0.0
    %836 = vmatpush1.msra.mxu0 %v89
    %837 = vmatprep.subr.mxu0 0.0
    %838 = vmatpush1.msra.mxu0 0.0
    %839 = vmatprep.subr.mxu0 0.0
    %840 = vmatpush1.msra.mxu0 0.0
    %841 = vmatprep.subr.mxu0 0.0
    %842 = vmatpush1.msra.mxu0 0.0
    %843 = vmatprep.subr.mxu0 0.0
    %844 = vmatpush1.msra.mxu0 0.0
    %845 = vmatprep.subr.mxu0 0.0
    %846 = vmatpush1.msra.mxu0 0.0
    %847 = vmatprep.subr.mxu0 0.0
    %848 = vmatpush1.msra.mxu0 0.0
    %849 = vmatprep.subr.mxu0 0.0
    %850 = vmatpush1.msra.mxu0 0.0
    %851 = vmatprep.subr.mxu0 0.0
    %852 = vmatpush1.msra.mxu0 0.0
    %853 = vmatprep.subr.mxu0 0.0
    %854 = vmatpush1.msra.mxu0 0.0
    %855 = vmatprep.subr.mxu0 0.0
    %856 = vmatpush1.msra.mxu0 0.0
    %857 = vmatprep.subr.mxu0 0.0
    %858 = vmatpush1.msra.mxu0 0.0
    %859 = vmatprep.subr.mxu0 0.0
    %860 = vmatpush1.msra.mxu0 0.0
    %861 = vmatprep.subr.mxu0 0.0
    %862 = vmatpush1.msra.mxu0 0.0
    %863 = vmatprep.subr.mxu0 0.0
    %864 = vmatpush1.msra.mxu0 0.0
    %865 = vmatprep.subr.mxu0 0.0
    %866 = vmatpush1.msra.mxu0 0.0
    %867 = vmatprep.subr.mxu0 0.0
    %868 = vmatpush1.msra.mxu0 0.0
    %869 = vmatprep.subr.mxu0 0.0
    %870 = vmatpush1.msra.mxu0 0.0
    %871 = vmatprep.subr.mxu0 0.0
    %872 = vmatpush1.msra.mxu0 0.0
    %873 = vmatprep.subr.mxu0 0.0
    %874 = vmatpush1.msra.mxu0 0.0
    %875 = vmatprep.subr.mxu0 0.0
    %876 = vmatpush1.msra.mxu0 0.0
    %877 = vmatprep.subr.mxu0 0.0
    %878 = vmatpush1.msra.mxu0 0.0
    %879 = vmatprep.subr.mxu0 0.0
    %880 = vmatpush1.msra.mxu0 0.0
    %881 = vmatprep.subr.mxu0 0.0
    %882 = vmatpush1.msra.mxu0 0.0
    %883 = vmatprep.subr.mxu0 0.0
    %884 = vmatpush1.msra.mxu0 0.0
    %885 = vmatprep.subr.mxu0 0.0
    %886 = vmatpush1.msra.mxu0 0.0
    %887 = vmatprep.subr.mxu0 0.0
    %888 = vmatpush1.msra.mxu0 0.0
    %889 = vmatprep.subr.mxu0 0.0
    %890 = vmatpush1.msra.mxu0 0.0
    %891 = vmatprep.subr.mxu0 0.0
    %892 = vmatpush1.msra.mxu0 0.0
    %893 = vmatprep.mubr.f32.mxu0 0.0
    %894 = vmatmul.mubr.f32.gmra.mrb[0].mxu0 %v824
    %v895 = vpop.f32.mrb[0].mxu0
    %v896 = vadd.f32 0.0, %v895
    %v897 = vpop.f32.mrb[0].mxu0
    %898 = vmatprep.mubr.f32.mxu0 0.0
    %899 = vmatmul.mubr.f32.gmra.mrb[0].mxu0 %v827
    %v900 = vpop.f32.mrb[0].mxu0
    %v901 = vadd.f32 0.0, %v900
    %v902 = vpop.f32.mrb[0].mxu0
    %903 = vdwg.mxu0
    %v904 = vmul.f32 %v819, %v819
    %v905 = vmul.f32 %v820, %v820
    %v907 = vsel %vm98, %v904, 0
    %v910 = vsel %vm98, %v905, 0
    %912 = vmatprep.subr.mxu0 0.0
    %913 = vmatpush1.msra.mxu0 %v86
    %914 = vmatprep.subr.mxu0 0.0
    %915 = vmatpush1.msra.mxu0 %v87
    %916 = vmatprep.subr.mxu0 0.0
    %917 = vmatpush1.msra.mxu0 %v88
    %918 = vmatprep.subr.mxu0 0.0
    %919 = vmatpush1.msra.mxu0 %v89
    %920 = vmatprep.subr.mxu0 0.0
    %921 = vmatpush1.msra.mxu0 0.0
    %922 = vmatprep.subr.mxu0 0.0
    %923 = vmatpush1.msra.mxu0 0.0
    %924 = vmatprep.subr.mxu0 0.0
    %925 = vmatpush1.msra.mxu0 0.0
    %926 = vmatprep.subr.mxu0 0.0
    %927 = vmatpush1.msra.mxu0 0.0
    %928 = vmatprep.subr.mxu0 0.0
    %929 = vmatpush1.msra.mxu0 0.0
    %930 = vmatprep.subr.mxu0 0.0
    %931 = vmatpush1.msra.mxu0 0.0
    %932 = vmatprep.subr.mxu0 0.0
    %933 = vmatpush1.msra.mxu0 0.0
    %934 = vmatprep.subr.mxu0 0.0
    %935 = vmatpush1.msra.mxu0 0.0
    %936 = vmatprep.subr.mxu0 0.0
    %937 = vmatpush1.msra.mxu0 0.0
    %938 = vmatprep.subr.mxu0 0.0
    %939 = vmatpush1.msra.mxu0 0.0
    %940 = vmatprep.subr.mxu0 0.0
    %941 = vmatpush1.msra.mxu0 0.0
    %942 = vmatprep.subr.mxu0 0.0
    %943 = vmatpush1.msra.mxu0 0.0
    %944 = vmatprep.subr.mxu0 0.0
    %945 = vmatpush1.msra.mxu0 0.0
    %946 = vmatprep.subr.mxu0 0.0
    %947 = vmatpush1.msra.mxu0 0.0
    %948 = vmatprep.subr.mxu0 0.0
    %949 = vmatpush1.msra.mxu0 0.0
    %950 = vmatprep.subr.mxu0 0.0
    %951 = vmatpush1.msra.mxu0 0.0
    %952 = vmatprep.subr.mxu0 0.0
    %953 = vmatpush1.msra.mxu0 0.0
    %954 = vmatprep.subr.mxu0 0.0
    %955 = vmatpush1.msra.mxu0 0.0
    %956 = vmatprep.subr.mxu0 0.0
    %957 = vmatpush1.msra.mxu0 0.0
    %958 = vmatprep.subr.mxu0 0.0
    %959 = vmatpush1.msra.mxu0 0.0
    %960 = vmatprep.subr.mxu0 0.0
    %961 = vmatpush1.msra.mxu0 0.0
    %962 = vmatprep.subr.mxu0 0.0
    %963 = vmatpush1.msra.mxu0 0.0
    %964 = vmatprep.subr.mxu0 0.0
    %965 = vmatpush1.msra.mxu0 0.0
    %966 = vmatprep.subr.mxu0 0.0
    %967 = vmatpush1.msra.mxu0 0.0
    %968 = vmatprep.subr.mxu0 0.0
    %969 = vmatpush1.msra.mxu0 0.0
    %970 = vmatprep.subr.mxu0 0.0
    %971 = vmatpush1.msra.mxu0 0.0
    %972 = vmatprep.subr.mxu0 0.0
    %973 = vmatpush1.msra.mxu0 0.0
    %974 = vmatprep.subr.mxu0 0.0
    %975 = vmatpush1.msra.mxu0 0.0
    %976 = vmatprep.mubr.f32.mxu0 0.0
    %977 = vmatmul.mubr.f32.gmra.mrb[0].mxu0 %v907
    %v978 = vpop.f32.mrb[0].mxu0
    %v979 = vadd.f32 0.0, %v978
    %v980 = vpop.f32.mrb[0].mxu0
    %981 = vmatprep.mubr.f32.mxu0 0.0
    %982 = vmatmul.mubr.f32.gmra.mrb[0].mxu0 %v910
    %v983 = vpop.f32.mrb[0].mxu0
    %v984 = vadd.f32 0.0, %v983
    %v985 = vpop.f32.mrb[0].mxu0
    %986 = vdwg.mxu0
    %v987 = vmul.f32 %v896, %v896
    %v988 = vmul.f32 %v901, %v901
    %v989 = vsub.f32 %v979, %v987
    %v990 = vsub.f32 %v984, %v988
    %v991 = vsub.f32 %v819, %v896
    %v992 = vsub.f32 %v820, %v901
    %v993 = vadd.f32 %v989, 1e-05
    %v994 = vadd.f32 %v990, 1e-05
    %v995 = vrsqrt.pop %v993
    %v996 = vrsqrt.pop %v994
    %v997 = vmul.f32 %v991, %v995
    %v998 = vmul.f32 %v992, %v996
    %v1000 = vlaneseq
    %v1001 = vshrl.u32 %v1000, 7
    %v1002 = vsub.s32 0, %v1001
    %v1003 = vrot.slane %v821, %v1002
    %v1005 = vmul.f32 %v997, %v1003
    %v1006 = vmul.f32 %v998, %v1003
    %v1008 = vlaneseq
    %v1009 = vshrl.u32 %v1008, 7
    %v1010 = vsub.s32 0, %v1009
    %v1011 = vrot.slane %v822, %v1010
    %v1013 = vadd.f32 %v1005, %v1011
    %v1014 = vadd.f32 %v1006, %v1011
    %v1015 = vld [vmem:[%s10] sm:$0xff]
    %v1016 = vld [vmem:[%s10 + $0x8] sm:$0xff]
    %v1017 = vld [vmem:[%s10 + $0x10] sm:$0xff]
    %v1018 = vld [vmem:[%s10 + $0x18] sm:$0xff]
    %v1019 = vld [vmem:[%s11] sm:$0x1]
    %v1021 = vlaneseq
    %v1022 = vshrl.u32 %v1021, 7
    %v1023 = vsub.s32 0, %v1022
    %v1024 = vrot.slane %v1019, %v1023
    %v1027 = vsel %vm98, %v1013, 0
    %v1030 = vsel %vm98, %v1014, 0
    %1032 = vmatprep.subr.mxu0 0.0
    %1033 = vmatpush1.msra.mxu0 %v1015
    %1034 = vmatprep.subr.mxu0 0.0
    %1035 = vmatpush1.msra.mxu0 %v1016
    %1036 = vmatprep.subr.mxu0 0.0
    %1037 = vmatpush1.msra.mxu0 %v1017
    %1038 = vmatprep.subr.mxu0 0.0
    %1039 = vmatpush1.msra.mxu0 %v1018
    %1040 = vmatprep.subr.mxu0 0.0
    %1041 = vmatpush1.msra.mxu0 0.0
    %1042 = vmatprep.subr.mxu0 0.0
    %1043 = vmatpush1.msra.mxu0 0.0
    %1044 = vmatprep.subr.mxu0 0.0
    %1045 = vmatpush1.msra.mxu0 0.0
    %1046 = vmatprep.subr.mxu0 0.0
    %1047 = vmatpush1.msra.mxu0 0.0
    %1048 = vmatprep.subr.mxu0 0.0
    %1049 = vmatpush1.msra.mxu0 0.0
    %1050 = vmatprep.subr.mxu0 0.0
    %1051 = vmatpush1.msra.mxu0 0.0
    %1052 = vmatprep.subr.mxu0 0.0
    %1053 = vmatpush1.msra.mxu0 0.0
    %1054 = vmatprep.subr.mxu0 0.0
    %1055 = vmatpush1.msra.mxu0 0.0
    %1056 = vmatprep.subr.mxu0 0.0
    %1057 = vmatpush1.msra.mxu0 0.0
    %1058 = vmatprep.subr.mxu0 0.0
    %1059 = vmatpush1.msra.mxu0 0.0
    %1060 = vmatprep.subr.mxu0 0.0
    %1061 = vmatpush1.msra.mxu0 0.0
    %1062 = vmatprep.subr.mxu0 0.0
    %1063 = vmatpush1.msra.mxu0 0.0
    %1064 = vmatprep.subr.mxu0 0.0
    %1065 = vmatpush1.msra.mxu0 0.0
    %1066 = vmatprep.subr.mxu0 0.0
    %1067 = vmatpush1.msra.mxu0 0.0
    %1068 = vmatprep.subr.mxu0 0.0
    %1069 = vmatpush1.msra.mxu0 0.0
    %1070 = vmatprep.subr.mxu0 0.0
    %1071 = vmatpush1.msra.mxu0 0.0
    %1072 = vmatprep.subr.mxu0 0.0
    %1073 = vmatpush1.msra.mxu0 0.0
    %1074 = vmatprep.subr.mxu0 0.0
    %1075 = vmatpush1.msra.mxu0 0.0
    %1076 = vmatprep.subr.mxu0 0.0
    %1077 = vmatpush1.msra.mxu0 0.0
    %1078 = vmatprep.subr.mxu0 0.0
    %1079 = vmatpush1.msra.mxu0 0.0
    %1080 = vmatprep.subr.mxu0 0.0
    %1081 = vmatpush1.msra.mxu0 0.0
    %1082 = vmatprep.subr.mxu0 0.0
    %1083 = vmatpush1.msra.mxu0 0.0
    %1084 = vmatprep.subr.mxu0 0.0
    %1085 = vmatpush1.msra.mxu0 0.0
    %1086 = vmatprep.subr.mxu0 0.0
    %1087 = vmatpush1.msra.mxu0 0.0
    %1088 = vmatprep.subr.mxu0 0.0
    %1089 = vmatpush1.msra.mxu0 0.0
    %1090 = vmatprep.subr.mxu0 0.0
    %1091 = vmatpush1.msra.mxu0 0.0
    %1092 = vmatprep.subr.mxu0 0.0
    %1093 = vmatpush1.msra.mxu0 0.0
    %1094 = vmatprep.subr.mxu0 0.0
    %1095 = vmatpush1.msra.mxu0 0.0
    %1096 = vmatprep.mubr.f32.mxu0 0.0
    %1097 = vmatmul.mubr.f32.gmra.mrb[0].mxu0 %v1027
    %v1098 = vpop.f32.mrb[0].mxu0
    %v1099 = vadd.f32 %v1024, %v1098
    %v1100 = vpop.f32.mrb[0].mxu0
    %1101 = vmatprep.mubr.f32.mxu0 0.0
    %1102 = vmatmul.mubr.f32.gmra.mrb[0].mxu0 %v1030
    %v1103 = vpop.f32.mrb[0].mxu0
    %v1104 = vadd.f32 %v1024, %v1103
    %v1105 = vpop.f32.mrb[0].mxu0
    %1106 = vdwg.mxu0
    %v1107 = vmax.f32 %v1099, 0.0
    %v1108 = vmax.f32 %v1104, 0.0
    %v1109 = vld [vmem:[%s12] sm:$0xff]
    %v1110 = vld [vmem:[%s12 + $0x8] sm:$0xff]
    %v1111 = vld [vmem:[%s12 + $0x10] sm:$0xff]
    %v1112 = vld [vmem:[%s12 + $0x18] sm:$0xff]
    %v1113 = vld [vmem:[%s12 + $0x20] sm:$0xff]
    %v1114 = vld [vmem:[%s12 + $0x28] sm:$0xff]
    %v1115 = vld [vmem:[%s12 + $0x30] sm:$0xff]
    %v1116 = vld [vmem:[%s12 + $0x38] sm:$0xff]
    %v1117 = vld [vmem:[%s13] sm:$0x1]
    %v1119 = vlaneseq
    %v1120 = vshrl.u32 %v1119, 7
    %v1121 = vsub.s32 0, %v1120
    %v1122 = vrot.slane %v1117, %v1121
    %v1125 = vsel %vm548, %v1107, 0
    %v1128 = vsel %vm548, %v1108, 0
    %1130 = vmatprep.subr.mxu0 0.0
    %1131 = vmatpush1.msra.mxu0 %v1109
    %1132 = vmatprep.subr.mxu0 0.0
    %1133 = vmatpush1.msra.mxu0 %v1110
    %1134 = vmatprep.subr.mxu0 0.0
    %1135 = vmatpush1.msra.mxu0 %v1111
    %1136 = vmatprep.subr.mxu0 0.0
    %1137 = vmatpush1.msra.mxu0 %v1112
    %1138 = vmatprep.subr.mxu0 0.0
    %1139 = vmatpush1.msra.mxu0 %v1113
    %1140 = vmatprep.subr.mxu0 0.0
    %1141 = vmatpush1.msra.mxu0 %v1114
    %1142 = vmatprep.subr.mxu0 0.0
    %1143 = vmatpush1.msra.mxu0 %v1115
    %1144 = vmatprep.subr.mxu0 0.0
    %1145 = vmatpush1.msra.mxu0 %v1116
    %1146 = vmatprep.subr.mxu0 0.0
    %1147 = vmatpush1.msra.mxu0 0.0
    %1148 = vmatprep.subr.mxu0 0.0
    %1149 = vmatpush1.msra.mxu0 0.0
    %1150 = vmatprep.subr.mxu0 0.0
    %1151 = vmatpush1.msra.mxu0 0.0
    %1152 = vmatprep.subr.mxu0 0.0
    %1153 = vmatpush1.msra.mxu0 0.0
    %1154 = vmatprep.subr.mxu0 0.0
    %1155 = vmatpush1.msra.mxu0 0.0
    %1156 = vmatprep.subr.mxu0 0.0
    %1157 = vmatpush1.msra.mxu0 0.0
    %1158 = vmatprep.subr.mxu0 0.0
    %1159 = vmatpush1.msra.mxu0 0.0
    %1160 = vmatprep.subr.mxu0 0.0
    %1161 = vmatpush1.msra.mxu0 0.0
    %1162 = vmatprep.subr.mxu0 0.0
    %1163 = vmatpush1.msra.mxu0 0.0
    %1164 = vmatprep.subr.mxu0 0.0
    %1165 = vmatpush1.msra.mxu0 0.0
    %1166 = vmatprep.subr.mxu0 0.0
    %1167 = vmatpush1.msra.mxu0 0.0
    %1168 = vmatprep.subr.mxu0 0.0
    %1169 = vmatpush1.msra.mxu0 0.0
    %1170 = vmatprep.subr.mxu0 0.0
    %1171 = vmatpush1.msra.mxu0 0.0
    %1172 = vmatprep.subr.mxu0 0.0
    %1173 = vmatpush1.msra.mxu0 0.0
    %1174 = vmatprep.subr.mxu0 0.0
    %1175 = vmatpush1.msra.mxu0 0.0
    %1176 = vmatprep.subr.mxu0 0.0
    %1177 = vmatpush1.msra.mxu0 0.0
    %1178 = vmatprep.subr.mxu0 0.0
    %1179 = vmatpush1.msra.mxu0 0.0
    %1180 = vmatprep.subr.mxu0 0.0
    %1181 = vmatpush1.msra.mxu0 0.0
    %1182 = vmatprep.subr.mxu0 0.0
    %1183 = vmatpush1.msra.mxu0 0.0
    %1184 = vmatprep.subr.mxu0 0.0
    %1185 = vmatpush1.msra.mxu0 0.0
    %1186 = vmatprep.subr.mxu0 0.0
    %1187 = vmatpush1.msra.mxu0 0.0
    %1188 = vmatprep.subr.mxu0 0.0
    %1189 = vmatpush1.msra.mxu0 0.0
    %1190 = vmatprep.subr.mxu0 0.0
    %1191 = vmatpush1.msra.mxu0 0.0
    %1192 = vmatprep.subr.mxu0 0.0
    %1193 = vmatpush1.msra.mxu0 0.0
    %1194 = vmatprep.mubr.f32.mxu0 0.0
    %1195 = vmatmul.mubr.f32.gmra.mrb[0].mxu0 %v1125
    %v1196 = vpop.f32.mrb[0].mxu0
    %v1197 = vadd.f32 %v1122, %v1196
    %v1198 = vpop.f32.mrb[0].mxu0
    %1199 = vmatprep.mubr.f32.mxu0 0.0
    %1200 = vmatmul.mubr.f32.gmra.mrb[0].mxu0 %v1128
    %v1201 = vpop.f32.mrb[0].mxu0
    %v1202 = vadd.f32 %v1122, %v1201
    %v1203 = vpop.f32.mrb[0].mxu0
    %1204 = vdwg.mxu0
    %v1205 = vadd.f32 %v1013, %v1197
    %v1206 = vadd.f32 %v1014, %v1202
    %v1207 = vld [vmem:[%s16] sm:$0x1]
    %v1208 = vld [vmem:[%s17] sm:$0x1]
    %v1210 = vsel %vm98, %v1205, 0
    %v1213 = vsel %vm98, %v1206, 0
    %1215 = vmatprep.subr.mxu0 0.0
    %1216 = vmatpush1.msra.mxu0 %v86
    %1217 = vmatprep.subr.mxu0 0.0
    %1218 = vmatpush1.msra.mxu0 %v87
    %1219 = vmatprep.subr.mxu0 0.0
    %1220 = vmatpush1.msra.mxu0 %v88
    %1221 = vmatprep.subr.mxu0 0.0
    %1222 = vmatpush1.msra.mxu0 %v89
    %1223 = vmatprep.subr.mxu0 0.0
    %1224 = vmatpush1.msra.mxu0 0.0
    %1225 = vmatprep.subr.mxu0 0.0
    %1226 = vmatpush1.msra.mxu0 0.0
    %1227 = vmatprep.subr.mxu0 0.0
    %1228 = vmatpush1.msra.mxu0 0.0
    %1229 = vmatprep.subr.mxu0 0.0
    %1230 = vmatpush1.msra.mxu0 0.0
    %1231 = vmatprep.subr.mxu0 0.0
    %1232 = vmatpush1.msra.mxu0 0.0
    %1233 = vmatprep.subr.mxu0 0.0
    %1234 = vmatpush1.msra.mxu0 0.0
    %1235 = vmatprep.subr.mxu0 0.0
    %1236 = vmatpush1.msra.mxu0 0.0
    %1237 = vmatprep.subr.mxu0 0.0
    %1238 = vmatpush1.msra.mxu0 0.0
    %1239 = vmatprep.subr.mxu0 0.0
    %1240 = vmatpush1.msra.mxu0 0.0
    %1241 = vmatprep.subr.mxu0 0.0
    %1242 = vmatpush1.msra.mxu0 0.0
    %1243 = vmatprep.subr.mxu0 0.0
    %1244 = vmatpush1.msra.mxu0 0.0
    %1245 = vmatprep.subr.mxu0 0.0
    %1246 = vmatpush1.msra.mxu0 0.0
    %1247 = vmatprep.subr.mxu0 0.0
    %1248 = vmatpush1.msra.mxu0 0.0
    %1249 = vmatprep.subr.mxu0 0.0
    %1250 = vmatpush1.msra.mxu0 0.0
    %1251 = vmatprep.subr.mxu0 0.0
    %1252 = vmatpush1.msra.mxu0 0.0
    %1253 = vmatprep.subr.mxu0 0.0
    %1254 = vmatpush1.msra.mxu0 0.0
    %1255 = vmatprep.subr.mxu0 0.0
    %1256 = vmatpush1.msra.mxu0 0.0
    %1257 = vmatprep.subr.mxu0 0.0
    %1258 = vmatpush1.msra.mxu0 0.0
    %1259 = vmatprep.subr.mxu0 0.0
    %1260 = vmatpush1.msra.mxu0 0.0
    %1261 = vmatprep.subr.mxu0 0.0
    %1262 = vmatpush1.msra.mxu0 0.0
    %1263 = vmatprep.subr.mxu0 0.0
    %1264 = vmatpush1.msra.mxu0 0.0
    %1265 = vmatprep.subr.mxu0 0.0
    %1266 = vmatpush1.msra.mxu0 0.0
    %1267 = vmatprep.subr.mxu0 0.0
    %1268 = vmatpush1.msra.mxu0 0.0
    %1269 = vmatprep.subr.mxu0 0.0
    %1270 = vmatpush1.msra.mxu0 0.0
    %1271 = vmatprep.subr.mxu0 0.0
    %1272 = vmatpush1.msra.mxu0 0.0
    %1273 = vmatprep.subr.mxu0 0.0
    %1274 = vmatpush1.msra.mxu0 0.0
    %1275 = vmatprep.subr.mxu0 0.0
    %1276 = vmatpush1.msra.mxu0 0.0
    %1277 = vmatprep.subr.mxu0 0.0
    %1278 = vmatpush1.msra.mxu0 0.0
    %1279 = vmatprep.mubr.f32.mxu0 0.0
    %1280 = vmatmul.mubr.f32.gmra.mrb[0].mxu0 %v1210
    %v1281 = vpop.f32.mrb[0].mxu0
    %v1282 = vadd.f32 0.0, %v1281
    %v1283 = vpop.f32.mrb[0].mxu0
    %1284 = vmatprep.mubr.f32.mxu0 0.0
    %1285 = vmatmul.mubr.f32.gmra.mrb[0].mxu0 %v1213
    %v1286 = vpop.f32.mrb[0].mxu0
    %v1287 = vadd.f32 0.0, %v1286
    %v1288 = vpop.f32.mrb[0].mxu0
    %1289 = vdwg.mxu0
    %v1290 = vmul.f32 %v1205, %v1205
    %v1291 = vmul.f32 %v1206, %v1206
    %v1293 = vsel %vm98, %v1290, 0
    %v1296 = vsel %vm98, %v1291, 0
    %1298 = vmatprep.subr.mxu0 0.0
    %1299 = vmatpush1.msra.mxu0 %v86
    %1300 = vmatprep.subr.mxu0 0.0
    %1301 = vmatpush1.msra.mxu0 %v87
    %1302 = vmatprep.subr.mxu0 0.0
    %1303 = vmatpush1.msra.mxu0 %v88
    %1304 = vmatprep.subr.mxu0 0.0
    %1305 = vmatpush1.msra.mxu0 %v89
    %1306 = vmatprep.subr.mxu0 0.0
    %1307 = vmatpush1.msra.mxu0 0.0
    %1308 = vmatprep.subr.mxu0 0.0
    %1309 = vmatpush1.msra.mxu0 0.0
    %1310 = vmatprep.subr.mxu0 0.0
    %1311 = vmatpush1.msra.mxu0 0.0
    %1312 = vmatprep.subr.mxu0 0.0
    %1313 = vmatpush1.msra.mxu0 0.0
    %1314 = vmatprep.subr.mxu0 0.0
    %1315 = vmatpush1.msra.mxu0 0.0
    %1316 = vmatprep.subr.mxu0 0.0
    %1317 = vmatpush1.msra.mxu0 0.0
    %1318 = vmatprep.subr.mxu0 0.0
    %1319 = vmatpush1.msra.mxu0 0.0
    %1320 = vmatprep.subr.mxu0 0.0
    %1321 = vmatpush1.msra.mxu0 0.0
    %1322 = vmatprep.subr.mxu0 0.0
    %1323 = vmatpush1.msra.mxu0 0.0
    %1324 = vmatprep.subr.mxu0 0.0
    %1325 = vmatpush1.msra.mxu0 0.0
    %1326 = vmatprep.subr.mxu0 0.0
    %1327 = vmatpush1.msra.mxu0 0.0
    %1328 = vmatprep.subr.mxu0 0.0
    %1329 = vmatpush1.msra.mxu0 0.0
    %1330 = vmatprep.subr.mxu0 0.0
    %1331 = vmatpush1.msra.mxu0 0.0
    %1332 = vmatprep.subr.mxu0 0.0
    %1333 = vmatpush1.msra.mxu0 0.0
    %1334 = vmatprep.subr.mxu0 0.0
    %1335 = vmatpush1.msra.mxu0 0.0
    %1336 = vmatprep.subr.mxu0 0.0
    %1337 = vmatpush1.msra.mxu0 0.0
    %1338 = vmatprep.subr.mxu0 0.0
    %1339 = vmatpush1.msra.mxu0 0.0
    %1340 = vmatprep.subr.mxu0 0.0
    %1341 = vmatpush1.msra.mxu0 0.0
    %1342 = vmatprep.subr.mxu0 0.0
    %1343 = vmatpush1.msra.mxu0 0.0
    %1344 = vmatprep.subr.mxu0 0.0
    %1345 = vmatpush1.msra.mxu0 0.0
    %1346 = vmatprep.subr.mxu0 0.0
    %1347 = vmatpush1.msra.mxu0 0.0
    %1348 = vmatprep.subr.mxu0 0.0
    %1349 = vmatpush1.msra.mxu0 0.0
    %1350 = vmatprep.subr.mxu0 0.0
    %1351 = vmatpush1.msra.mxu0 0.0
    %1352 = vmatprep.subr.mxu0 0.0
    %1353 = vmatpush1.msra.mxu0 0.0
    %1354 = vmatprep.subr.mxu0 0.0
    %1355 = vmatpush1.msra.mxu0 0.0
    %1356 = vmatprep.subr.mxu0 0.0
    %1357 = vmatpush1.msra.mxu0 0.0
    %1358 = vmatprep.subr.mxu0 0.0
    %1359 = vmatpush1.msra.mxu0 0.0
    %1360 = vmatprep.subr.mxu0 0.0
    %1361 = vmatpush1.msra.mxu0 0.0
    %1362 = vmatprep.mubr.f32.mxu0 0.0
    %1363 = vmatmul.mubr.f32.gmra.mrb[0].mxu0 %v1293
    %v1364 = vpop.f32.mrb[0].mxu0
    %v1365 = vadd.f32 0.0, %v1364
    %v1366 = vpop.f32.mrb[0].mxu0
    %1367 = vmatprep.mubr.f32.mxu0 0.0
    %1368 = vmatmul.mubr.f32.gmra.mrb[0].mxu0 %v1296
    %v1369 = vpop.f32.mrb[0].mxu0
    %v1370 = vadd.f32 0.0, %v1369
    %v1371 = vpop.f32.mrb[0].mxu0
    %1372 = vdwg.mxu0
    %v1373 = vmul.f32 %v1282, %v1282
    %v1374 = vmul.f32 %v1287, %v1287
    %v1375 = vsub.f32 %v1365, %v1373
    %v1376 = vsub.f32 %v1370, %v1374
    %v1377 = vsub.f32 %v1205, %v1282
    %v1378 = vsub.f32 %v1206, %v1287
    %v1379 = vadd.f32 %v1375, 1e-05
    %v1380 = vadd.f32 %v1376, 1e-05
    %v1381 = vrsqrt.pop %v1379
    %v1382 = vrsqrt.pop %v1380
    %v1383 = vmul.f32 %v1377, %v1381
    %v1384 = vmul.f32 %v1378, %v1382
    %v1386 = vlaneseq
    %v1387 = vshrl.u32 %v1386, 7
    %v1388 = vsub.s32 0, %v1387
    %v1389 = vrot.slane %v1207, %v1388
    %v1391 = vmul.f32 %v1383, %v1389
    %v1392 = vmul.f32 %v1384, %v1389
    %v1394 = vlaneseq
    %v1395 = vshrl.u32 %v1394, 7
    %v1396 = vsub.s32 0, %v1395
    %v1397 = vrot.slane %v1208, %v1396
    %v1399 = vadd.f32 %v1391, %v1397
    %v1400 = vadd.f32 %v1392, %v1397
    %s1401 = scalar_lea.vmem %s7, 32
    %v1402 = vld [vmem:[%s1401] sm:$0xff]
    %v1403 = vld [vmem:[%s1401 + $0x8] sm:$0xff]
    %v1404 = vld [vmem:[%s1401 + $0x10] sm:$0xff]
    %v1405 = vld [vmem:[%s1401 + $0x18] sm:$0xff]
    %s1406 = scalar_lea.vmem %s1, 16
    %v1407 = vld [vmem:[%s1406] sm:$0xff]
    %v1408 = vld [vmem:[%s1406 + $0x8] sm:$0xff]
    %v1410 = vsel %vm98, %v1399, 0
    %v1413 = vsel %vm98, %v1400, 0
    %1415 = vmatprep.subr.mxu0 0.0
    %1416 = vmatpush1.msra.mxu0 %v1402
    %1417 = vmatprep.subr.mxu0 0.0
    %1418 = vmatpush1.msra.mxu0 %v1403
    %1419 = vmatprep.subr.mxu0 0.0
    %1420 = vmatpush1.msra.mxu0 %v1404
    %1421 = vmatprep.subr.mxu0 0.0
    %1422 = vmatpush1.msra.mxu0 %v1405
    %1423 = vmatprep.subr.mxu0 0.0
    %1424 = vmatpush1.msra.mxu0 0.0
    %1425 = vmatprep.subr.mxu0 0.0
    %1426 = vmatpush1.msra.mxu0 0.0
    %1427 = vmatprep.subr.mxu0 0.0
    %1428 = vmatpush1.msra.mxu0 0.0
    %1429 = vmatprep.subr.mxu0 0.0
    %1430 = vmatpush1.msra.mxu0 0.0
    %1431 = vmatprep.subr.mxu0 0.0
    %1432 = vmatpush1.msra.mxu0 0.0
    %1433 = vmatprep.subr.mxu0 0.0
    %1434 = vmatpush1.msra.mxu0 0.0
    %1435 = vmatprep.subr.mxu0 0.0
    %1436 = vmatpush1.msra.mxu0 0.0
    %1437 = vmatprep.subr.mxu0 0.0
    %1438 = vmatpush1.msra.mxu0 0.0
    %1439 = vmatprep.subr.mxu0 0.0
    %1440 = vmatpush1.msra.mxu0 0.0
    %1441 = vmatprep.subr.mxu0 0.0
    %1442 = vmatpush1.msra.mxu0 0.0
    %1443 = vmatprep.subr.mxu0 0.0
    %1444 = vmatpush1.msra.mxu0 0.0
    %1445 = vmatprep.subr.mxu0 0.0
    %1446 = vmatpush1.msra.mxu0 0.0
    %1447 = vmatprep.subr.mxu0 0.0
    %1448 = vmatpush1.msra.mxu0 0.0
    %1449 = vmatprep.subr.mxu0 0.0
    %1450 = vmatpush1.msra.mxu0 0.0
    %1451 = vmatprep.subr.mxu0 0.0
    %1452 = vmatpush1.msra.mxu0 0.0
    %1453 = vmatprep.subr.mxu0 0.0
    %1454 = vmatpush1.msra.mxu0 0.0
    %1455 = vmatprep.subr.mxu0 0.0
    %1456 = vmatpush1.msra.mxu0 0.0
    %1457 = vmatprep.subr.mxu0 0.0
    %1458 = vmatpush1.msra.mxu0 0.0
    %1459 = vmatprep.subr.mxu0 0.0
    %1460 = vmatpush1.msra.mxu0 0.0
    %1461 = vmatprep.subr.mxu0 0.0
    %1462 = vmatpush1.msra.mxu0 0.0
    %1463 = vmatprep.subr.mxu0 0.0
    %1464 = vmatpush1.msra.mxu0 0.0
    %1465 = vmatprep.subr.mxu0 0.0
    %1466 = vmatpush1.msra.mxu0 0.0
    %1467 = vmatprep.subr.mxu0 0.0
    %1468 = vmatpush1.msra.mxu0 0.0
    %1469 = vmatprep.subr.mxu0 0.0
    %1470 = vmatpush1.msra.mxu0 0.0
    %1471 = vmatprep.subr.mxu0 0.0
    %1472 = vmatpush1.msra.mxu0 0.0
    %1473 = vmatprep.subr.mxu0 0.0
    %1474 = vmatpush1.msra.mxu0 0.0
    %1475 = vmatprep.subr.mxu0 0.0
    %1476 = vmatpush1.msra.mxu0 0.0
    %1477 = vmatprep.subr.mxu0 0.0
    %1478 = vmatpush1.msra.mxu0 0.0
    %1479 = vmatprep.mubr.f32.mxu0 0.0
    %1480 = vmatmul.mubr.f32.gmra.mrb[0].mxu0 %v1410
    %v1481 = vpop.f32.mrb[0].mxu0
    %v1482 = vadd.f32 %v1407, %v1481
    %v1483 = vpop.f32.mrb[0].mxu0
    %1484 = vmatprep.mubr.f32.mxu0 0.0
    %1485 = vmatmul.mubr.f32.gmra.mrb[0].mxu0 %v1413
    %v1486 = vpop.f32.mrb[0].mxu0
    %v1487 = vadd.f32 %v1408, %v1486
    %v1488 = vpop.f32.mrb[0].mxu0
    %1489 = vdwg.mxu0
    %1492 = vrot.lane.b32.xlu0 %v1482, 96
    %v1493 = vpop.permute.xlu0 %1492
    %1494 = vrot.lane.b32.xlu0 %v1487, 96
    %v1495 = vpop.permute.xlu0 %1494
    %1498 = vmatprep.subr.mxu0 0.0
    %1499 = vmatpush1.msra.mxu0 %v1493
    %1500 = vmatprep.subr.mxu0 0.0
    %1501 = vmatpush1.msra.mxu0 %v1495
    %1502 = vmatprep.subr.mxu0 0.0
    %1503 = vmatpush1.msra.mxu0 0.0
    %1504 = vmatprep.subr.mxu0 0.0
    %1505 = vmatpush1.msra.mxu0 0.0
    %1506 = vmatprep.subr.mxu0 0.0
    %1507 = vmatpush1.msra.mxu0 0.0
    %1508 = vmatprep.subr.mxu0 0.0
    %1509 = vmatpush1.msra.mxu0 0.0
    %1510 = vmatprep.subr.mxu0 0.0
    %1511 = vmatpush1.msra.mxu0 0.0
    %1512 = vmatprep.subr.mxu0 0.0
    %1513 = vmatpush1.msra.mxu0 0.0
    %1514 = vmatprep.subr.mxu0 0.0
    %1515 = vmatpush1.msra.mxu0 0.0
    %1516 = vmatprep.subr.mxu0 0.0
    %1517 = vmatpush1.msra.mxu0 0.0
    %1518 = vmatprep.subr.mxu0 0.0
    %1519 = vmatpush1.msra.mxu0 0.0
    %1520 = vmatprep.subr.mxu0 0.0
    %1521 = vmatpush1.msra.mxu0 0.0
    %1522 = vmatprep.subr.mxu0 0.0
    %1523 = vmatpush1.msra.mxu0 0.0
    %1524 = vmatprep.subr.mxu0 0.0
    %1525 = vmatpush1.msra.mxu0 0.0
    %1526 = vmatprep.subr.mxu0 0.0
    %1527 = vmatpush1.msra.mxu0 0.0
    %1528 = vmatprep.subr.mxu0 0.0
    %1529 = vmatpush1.msra.mxu0 0.0
    %1530 = vmatprep.subr.mxu0 0.0
    %1531 = vmatpush1.msra.mxu0 0.0
    %1532 = vmatprep.subr.mxu0 0.0
    %1533 = vmatpush1.msra.mxu0 0.0
    %1534 = vmatprep.subr.mxu0 0.0
    %1535 = vmatpush1.msra.mxu0 0.0
    %1536 = vmatprep.subr.mxu0 0.0
    %1537 = vmatpush1.msra.mxu0 0.0
    %1538 = vmatprep.subr.mxu0 0.0
    %1539 = vmatpush1.msra.mxu0 0.0
    %1540 = vmatprep.subr.mxu0 0.0
    %1541 = vmatpush1.msra.mxu0 0.0
    %1542 = vmatprep.subr.mxu0 0.0
    %1543 = vmatpush1.msra.mxu0 0.0
    %1544 = vmatprep.subr.mxu0 0.0
    %1545 = vmatpush1.msra.mxu0 0.0
    %1546 = vmatprep.subr.mxu0 0.0
    %1547 = vmatpush1.msra.mxu0 0.0
    %1548 = vmatprep.subr.mxu0 0.0
    %1549 = vmatpush1.msra.mxu0 0.0
    %1550 = vmatprep.subr.mxu0 0.0
    %1551 = vmatpush1.msra.mxu0 0.0
    %1552 = vmatprep.subr.mxu0 0.0
    %1553 = vmatpush1.msra.mxu0 0.0
    %1554 = vmatprep.subr.mxu0 0.0
    %1555 = vmatpush1.msra.mxu0 0.0
    %1556 = vmatprep.subr.mxu0 0.0
    %1557 = vmatpush1.msra.mxu0 0.0
    %1558 = vmatprep.subr.mxu0 0.0
    %1559 = vmatpush1.msra.mxu0 0.0
    %1560 = vmatprep.subr.mxu0 0.0
    %1561 = vmatpush1.msra.mxu0 0.0
    %1562 = vmatprep.mubr.f32.mxu0 0.0
    %1563 = vmatmul.mubr.f32.gmra.mrb[0].mxu0 %v190
    %v1564 = vpop.f32.mrb[0].mxu0
    %v1565 = vadd.f32 0.0, %v1564
    %v1566 = vpop.f32.mrb[0].mxu0
    %1567 = vmatprep.mubr.f32.mxu0 0.0
    %1568 = vmatmul.mubr.f32.gmra.mrb[0].mxu0 %v193
    %v1569 = vpop.f32.mrb[0].mxu0
    %v1570 = vadd.f32 0.0, %v1569
    %v1571 = vpop.f32.mrb[0].mxu0
    %1572 = vmatprep.mubr.f32.mxu0 0.0
    %1573 = vmatmul.mubr.f32.gmra.mrb[0].mxu0 %v196
    %v1574 = vpop.f32.mrb[0].mxu0
    %v1575 = vadd.f32 0.0, %v1574
    %v1576 = vpop.f32.mrb[0].mxu0
    %1577 = vmatprep.mubr.f32.mxu0 0.0
    %1578 = vmatmul.mubr.f32.gmra.mrb[0].mxu0 %v199
    %v1579 = vpop.f32.mrb[0].mxu0
    %v1580 = vadd.f32 0.0, %v1579
    %v1581 = vpop.f32.mrb[0].mxu0
    %1582 = vmatprep.mubr.f32.mxu0 0.0
    %1583 = vmatmul.mubr.f32.gmra.mrb[0].mxu0 %v202
    %v1584 = vpop.f32.mrb[0].mxu0
    %v1585 = vadd.f32 0.0, %v1584
    %v1586 = vpop.f32.mrb[0].mxu0
    %1587 = vmatprep.mubr.f32.mxu0 0.0
    %1588 = vmatmul.mubr.f32.gmra.mrb[0].mxu0 %v205
    %v1589 = vpop.f32.mrb[0].mxu0
    %v1590 = vadd.f32 0.0, %v1589
    %v1591 = vpop.f32.mrb[0].mxu0
    %1592 = vmatprep.mubr.f32.mxu0 0.0
    %1593 = vmatmul.mubr.f32.gmra.mrb[0].mxu0 %v208
    %v1594 = vpop.f32.mrb[0].mxu0
    %v1595 = vadd.f32 0.0, %v1594
    %v1596 = vpop.f32.mrb[0].mxu0
    %1597 = vmatprep.mubr.f32.mxu0 0.0
    %1598 = vmatmul.mubr.f32.gmra.mrb[0].mxu0 %v211
    %v1599 = vpop.f32.mrb[0].mxu0
    %v1600 = vadd.f32 0.0, %v1599
    %v1601 = vpop.f32.mrb[0].mxu0
    %1602 = vdwg.mxu0
    %v1603 = vmul.f32 %v1565, %v68
    %v1604 = vmul.f32 %v1570, %v69
    %v1605 = vmul.f32 %v1575, %v70
    %v1606 = vmul.f32 %v1580, %v71
    %v1607 = vmul.f32 %v1585, %v72
    %v1608 = vmul.f32 %v1590, %v73
    %v1609 = vmul.f32 %v1595, %v74
    %v1610 = vmul.f32 %v1600, %v75
    %1611 = vrot.lane.b32.xlu0 %v1482, 64
    %v1612 = vpop.permute.xlu0 %1611
    %1613 = vrot.lane.b32.xlu0 %v1487, 64
    %v1614 = vpop.permute.xlu0 %1613
    %1617 = vmatprep.subr.mxu0 0.0
    %1618 = vmatpush1.msra.mxu0 %v1612
    %1619 = vmatprep.subr.mxu0 0.0
    %1620 = vmatpush1.msra.mxu0 %v1614
    %1621 = vmatprep.subr.mxu0 0.0
    %1622 = vmatpush1.msra.mxu0 0.0
    %1623 = vmatprep.subr.mxu0 0.0
    %1624 = vmatpush1.msra.mxu0 0.0
    %1625 = vmatprep.subr.mxu0 0.0
    %1626 = vmatpush1.msra.mxu0 0.0
    %1627 = vmatprep.subr.mxu0 0.0
    %1628 = vmatpush1.msra.mxu0 0.0
    %1629 = vmatprep.subr.mxu0 0.0
    %1630 = vmatpush1.msra.mxu0 0.0
    %1631 = vmatprep.subr.mxu0 0.0
    %1632 = vmatpush1.msra.mxu0 0.0
    %1633 = vmatprep.subr.mxu0 0.0
    %1634 = vmatpush1.msra.mxu0 0.0
    %1635 = vmatprep.subr.mxu0 0.0
    %1636 = vmatpush1.msra.mxu0 0.0
    %1637 = vmatprep.subr.mxu0 0.0
    %1638 = vmatpush1.msra.mxu0 0.0
    %1639 = vmatprep.subr.mxu0 0.0
    %1640 = vmatpush1.msra.mxu0 0.0
    %1641 = vmatprep.subr.mxu0 0.0
    %1642 = vmatpush1.msra.mxu0 0.0
    %1643 = vmatprep.subr.mxu0 0.0
    %1644 = vmatpush1.msra.mxu0 0.0
    %1645 = vmatprep.subr.mxu0 0.0
    %1646 = vmatpush1.msra.mxu0 0.0
    %1647 = vmatprep.subr.mxu0 0.0
    %1648 = vmatpush1.msra.mxu0 0.0
    %1649 = vmatprep.subr.mxu0 0.0
    %1650 = vmatpush1.msra.mxu0 0.0
    %1651 = vmatprep.subr.mxu0 0.0
    %1652 = vmatpush1.msra.mxu0 0.0
    %1653 = vmatprep.subr.mxu0 0.0
    %1654 = vmatpush1.msra.mxu0 0.0
    %1655 = vmatprep.subr.mxu0 0.0
    %1656 = vmatpush1.msra.mxu0 0.0
    %1657 = vmatprep.subr.mxu0 0.0
    %1658 = vmatpush1.msra.mxu0 0.0
    %1659 = vmatprep.subr.mxu0 0.0
    %1660 = vmatpush1.msra.mxu0 0.0
    %1661 = vmatprep.subr.mxu0 0.0
    %1662 = vmatpush1.msra.mxu0 0.0
    %1663 = vmatprep.subr.mxu0 0.0
    %1664 = vmatpush1.msra.mxu0 0.0
    %1665 = vmatprep.subr.mxu0 0.0
    %1666 = vmatpush1.msra.mxu0 0.0
    %1667 = vmatprep.subr.mxu0 0.0
    %1668 = vmatpush1.msra.mxu0 0.0
    %1669 = vmatprep.subr.mxu0 0.0
    %1670 = vmatpush1.msra.mxu0 0.0
    %1671 = vmatprep.subr.mxu0 0.0
    %1672 = vmatpush1.msra.mxu0 0.0
    %1673 = vmatprep.subr.mxu0 0.0
    %1674 = vmatpush1.msra.mxu0 0.0
    %1675 = vmatprep.subr.mxu0 0.0
    %1676 = vmatpush1.msra.mxu0 0.0
    %1677 = vmatprep.subr.mxu0 0.0
    %1678 = vmatpush1.msra.mxu0 0.0
    %1679 = vmatprep.subr.mxu0 0.0
    %1680 = vmatpush1.msra.mxu0 0.0
    %1681 = vmatprep.mubr.f32.mxu0 0.0
    %1682 = vmatmul.mubr.f32.gmra.mrb[0].mxu0 %v190
    %v1683 = vpop.f32.mrb[0].mxu0
    %v1684 = vadd.f32 0.0, %v1683
    %v1685 = vpop.f32.mrb[0].mxu0
    %1686 = vmatprep.mubr.f32.mxu0 0.0
    %1687 = vmatmul.mubr.f32.gmra.mrb[0].mxu0 %v193
    %v1688 = vpop.f32.mrb[0].mxu0
    %v1689 = vadd.f32 0.0, %v1688
    %v1690 = vpop.f32.mrb[0].mxu0
    %1691 = vmatprep.mubr.f32.mxu0 0.0
    %1692 = vmatmul.mubr.f32.gmra.mrb[0].mxu0 %v196
    %v1693 = vpop.f32.mrb[0].mxu0
    %v1694 = vadd.f32 0.0, %v1693
    %v1695 = vpop.f32.mrb[0].mxu0
    %1696 = vmatprep.mubr.f32.mxu0 0.0
    %1697 = vmatmul.mubr.f32.gmra.mrb[0].mxu0 %v199
    %v1698 = vpop.f32.mrb[0].mxu0
    %v1699 = vadd.f32 0.0, %v1698
    %v1700 = vpop.f32.mrb[0].mxu0
    %1701 = vmatprep.mubr.f32.mxu0 0.0
    %1702 = vmatmul.mubr.f32.gmra.mrb[0].mxu0 %v202
    %v1703 = vpop.f32.mrb[0].mxu0
    %v1704 = vadd.f32 0.0, %v1703
    %v1705 = vpop.f32.mrb[0].mxu0
    %1706 = vmatprep.mubr.f32.mxu0 0.0
    %1707 = vmatmul.mubr.f32.gmra.mrb[0].mxu0 %v205
    %v1708 = vpop.f32.mrb[0].mxu0
    %v1709 = vadd.f32 0.0, %v1708
    %v1710 = vpop.f32.mrb[0].mxu0
    %1711 = vmatprep.mubr.f32.mxu0 0.0
    %1712 = vmatmul.mubr.f32.gmra.mrb[0].mxu0 %v208
    %v1713 = vpop.f32.mrb[0].mxu0
    %v1714 = vadd.f32 0.0, %v1713
    %v1715 = vpop.f32.mrb[0].mxu0
    %1716 = vmatprep.mubr.f32.mxu0 0.0
    %1717 = vmatmul.mubr.f32.gmra.mrb[0].mxu0 %v211
    %v1718 = vpop.f32.mrb[0].mxu0
    %v1719 = vadd.f32 0.0, %v1718
    %v1720 = vpop.f32.mrb[0].mxu0
    %1721 = vdwg.mxu0
    %v1722 = vmul.f32 %v1684, %v68
    %v1723 = vmul.f32 %v1689, %v69
    %v1724 = vmul.f32 %v1694, %v70
    %v1725 = vmul.f32 %v1699, %v71
    %v1726 = vmul.f32 %v1704, %v72
    %v1727 = vmul.f32 %v1709, %v73
    %v1728 = vmul.f32 %v1714, %v74
    %v1729 = vmul.f32 %v1719, %v75
    %v1730 = vsel %vm98, %v1482, 0
    %v1732 = vsel %vm98, %v1487, 0
    %v1735 = vsel %vm98, %v1603, 0
    %v1738 = vsel %vm98, %v1604, 0
    %v1741 = vsel %vm98, %v1605, 0
    %v1744 = vsel %vm98, %v1606, 0
    %v1747 = vsel %vm98, %v1607, 0
    %v1750 = vsel %vm98, %v1608, 0
    %v1753 = vsel %vm98, %v1609, 0
    %v1756 = vsel %vm98, %v1610, 0
    %1758 = vmatprep.subr.mxu0 0.0
    %1759 = vmatpush1.xpose.msra.mxu0 %v1735
    %1760 = vmatprep.subr.mxu0 0.0
    %1761 = vmatpush1.xpose.msra.mxu0 %v1738
    %1762 = vmatprep.subr.mxu0 0.0
    %1763 = vmatpush1.xpose.msra.mxu0 %v1741
    %1764 = vmatprep.subr.mxu0 0.0
    %1765 = vmatpush1.xpose.msra.mxu0 %v1744
    %1766 = vmatprep.subr.mxu0 0.0
    %1767 = vmatpush1.xpose.msra.mxu0 %v1747
    %1768 = vmatprep.subr.mxu0 0.0
    %1769 = vmatpush1.xpose.msra.mxu0 %v1750
    %1770 = vmatprep.subr.mxu0 0.0
    %1771 = vmatpush1.xpose.msra.mxu0 %v1753
    %1772 = vmatprep.subr.mxu0 0.0
    %1773 = vmatpush1.xpose.msra.mxu0 %v1756
    %1774 = vmatprep.subr.mxu0 0.0
    %1775 = vmatpush1.xpose.msra.mxu0 0.0
    %1776 = vmatprep.subr.mxu0 0.0
    %1777 = vmatpush1.xpose.msra.mxu0 0.0
    %1778 = vmatprep.subr.mxu0 0.0
    %1779 = vmatpush1.xpose.msra.mxu0 0.0
    %1780 = vmatprep.subr.mxu0 0.0
    %1781 = vmatpush1.xpose.msra.mxu0 0.0
    %1782 = vmatprep.subr.mxu0 0.0
    %1783 = vmatpush1.xpose.msra.mxu0 0.0
    %1784 = vmatprep.subr.mxu0 0.0
    %1785 = vmatpush1.xpose.msra.mxu0 0.0
    %1786 = vmatprep.subr.mxu0 0.0
    %1787 = vmatpush1.xpose.msra.mxu0 0.0
    %1788 = vmatprep.subr.mxu0 0.0
    %1789 = vmatpush1.xpose.msra.mxu0 0.0
    %1790 = vmatprep.subr.mxu0 0.0
    %1791 = vmatpush1.xpose.msra.mxu0 0.0
    %1792 = vmatprep.subr.mxu0 0.0
    %1793 = vmatpush1.xpose.msra.mxu0 0.0
    %1794 = vmatprep.subr.mxu0 0.0
    %1795 = vmatpush1.xpose.msra.mxu0 0.0
    %1796 = vmatprep.subr.mxu0 0.0
    %1797 = vmatpush1.xpose.msra.mxu0 0.0
    %1798 = vmatprep.subr.mxu0 0.0
    %1799 = vmatpush1.xpose.msra.mxu0 0.0
    %1800 = vmatprep.subr.mxu0 0.0
    %1801 = vmatpush1.xpose.msra.mxu0 0.0
    %1802 = vmatprep.subr.mxu0 0.0
    %1803 = vmatpush1.xpose.msra.mxu0 0.0
    %1804 = vmatprep.subr.mxu0 0.0
    %1805 = vmatpush1.xpose.msra.mxu0 0.0
    %1806 = vmatprep.subr.mxu0 0.0
    %1807 = vmatpush1.xpose.msra.mxu0 0.0
    %1808 = vmatprep.subr.mxu0 0.0
    %1809 = vmatpush1.xpose.msra.mxu0 0.0
    %1810 = vmatprep.subr.mxu0 0.0
    %1811 = vmatpush1.xpose.msra.mxu0 0.0
    %1812 = vmatprep.subr.mxu0 0.0
    %1813 = vmatpush1.xpose.msra.mxu0 0.0
    %1814 = vmatprep.subr.mxu0 0.0
    %1815 = vmatpush1.xpose.msra.mxu0 0.0
    %1816 = vmatprep.subr.mxu0 0.0
    %1817 = vmatpush1.xpose.msra.mxu0 0.0
    %1818 = vmatprep.subr.mxu0 0.0
    %1819 = vmatpush1.xpose.msra.mxu0 0.0
    %1820 = vmatprep.subr.mxu0 0.0
    %1821 = vmatpush1.xpose.msra.mxu0 0.0
    %1822 = vmatprep.mubr.f32.mxu0 0.0
    %1823 = vmatmul.mubr.f32.gmra.mrb[0].mxu0 %v1730
    %v1824 = vpop.f32.mrb[0].mxu0
    %v1825 = vadd.f32 %v76, %v1824
    %v1826 = vpop.f32.mrb[0].mxu0
    %1827 = vmatprep.mubr.f32.mxu0 0.0
    %1828 = vmatmul.mubr.f32.gmra.mrb[0].mxu0 %v1732
    %v1829 = vpop.f32.mrb[0].mxu0
    %v1830 = vadd.f32 %v77, %v1829
    %v1831 = vpop.f32.mrb[0].mxu0
    %1832 = vdwg.mxu0
    %v1833 = vsel %vm548, %v1825, -inf
    %1834 = vmax.xlane.f32.xlu0 %v1833
    %v1835 = vpop.xlane.xlu0 %1834
    %v1836 = vsel %vm548, %v1830, -inf
    %1837 = vmax.xlane.f32.xlu0 %v1836
    %v1838 = vpop.xlane.xlu0 %1837
    %v1839 = vsub.f32 %v1825, %v1835
    %v1840 = vsub.f32 %v1830, %v1838
    %v1841 = vmul.f32 %v1839, 1.442695
    %v1842 = vpow.pop %v1841
    %v1843 = vmul.f32 %v1840, 1.442695
    %v1844 = vpow.pop %v1843
    %v1846 = vsel %vm548, %v1842, 0
    %v1849 = vsel %vm548, %v1844, 0
    %1851 = vmatprep.subr.mxu0 0.0
    %1852 = vmatpush1.msra.mxu0 %v78
    %1853 = vmatprep.subr.mxu0 0.0
    %1854 = vmatpush1.msra.mxu0 %v79
    %1855 = vmatprep.subr.mxu0 0.0
    %1856 = vmatpush1.msra.mxu0 %v80
    %1857 = vmatprep.subr.mxu0 0.0
    %1858 = vmatpush1.msra.mxu0 %v81
    %1859 = vmatprep.subr.mxu0 0.0
    %1860 = vmatpush1.msra.mxu0 %v82
    %1861 = vmatprep.subr.mxu0 0.0
    %1862 = vmatpush1.msra.mxu0 %v83
    %1863 = vmatprep.subr.mxu0 0.0
    %1864 = vmatpush1.msra.mxu0 %v84
    %1865 = vmatprep.subr.mxu0 0.0
    %1866 = vmatpush1.msra.mxu0 %v85
    %1867 = vmatprep.subr.mxu0 0.0
    %1868 = vmatpush1.msra.mxu0 0.0
    %1869 = vmatprep.subr.mxu0 0.0
    %1870 = vmatpush1.msra.mxu0 0.0
    %1871 = vmatprep.subr.mxu0 0.0
    %1872 = vmatpush1.msra.mxu0 0.0
    %1873 = vmatprep.subr.mxu0 0.0
    %1874 = vmatpush1.msra.mxu0 0.0
    %1875 = vmatprep.subr.mxu0 0.0
    %1876 = vmatpush1.msra.mxu0 0.0
    %1877 = vmatprep.subr.mxu0 0.0
    %1878 = vmatpush1.msra.mxu0 0.0
    %1879 = vmatprep.subr.mxu0 0.0
    %1880 = vmatpush1.msra.mxu0 0.0
    %1881 = vmatprep.subr.mxu0 0.0
    %1882 = vmatpush1.msra.mxu0 0.0
    %1883 = vmatprep.subr.mxu0 0.0
    %1884 = vmatpush1.msra.mxu0 0.0
    %1885 = vmatprep.subr.mxu0 0.0
    %1886 = vmatpush1.msra.mxu0 0.0
    %1887 = vmatprep.subr.mxu0 0.0
    %1888 = vmatpush1.msra.mxu0 0.0
    %1889 = vmatprep.subr.mxu0 0.0
    %1890 = vmatpush1.msra.mxu0 0.0
    %1891 = vmatprep.subr.mxu0 0.0
    %1892 = vmatpush1.msra.mxu0 0.0
    %1893 = vmatprep.subr.mxu0 0.0
    %1894 = vmatpush1.msra.mxu0 0.0
    %1895 = vmatprep.subr.mxu0 0.0
    %1896 = vmatpush1.msra.mxu0 0.0
    %1897 = vmatprep.subr.mxu0 0.0
    %1898 = vmatpush1.msra.mxu0 0.0
    %1899 = vmatprep.subr.mxu0 0.0
    %1900 = vmatpush1.msra.mxu0 0.0
    %1901 = vmatprep.subr.mxu0 0.0
    %1902 = vmatpush1.msra.mxu0 0.0
    %1903 = vmatprep.subr.mxu0 0.0
    %1904 = vmatpush1.msra.mxu0 0.0
    %1905 = vmatprep.subr.mxu0 0.0
    %1906 = vmatpush1.msra.mxu0 0.0
    %1907 = vmatprep.subr.mxu0 0.0
    %1908 = vmatpush1.msra.mxu0 0.0
    %1909 = vmatprep.subr.mxu0 0.0
    %1910 = vmatpush1.msra.mxu0 0.0
    %1911 = vmatprep.subr.mxu0 0.0
    %1912 = vmatpush1.msra.mxu0 0.0
    %1913 = vmatprep.subr.mxu0 0.0
    %1914 = vmatpush1.msra.mxu0 0.0
    %1915 = vmatprep.mubr.f32.mxu0 0.0
    %1916 = vmatmul.mubr.f32.gmra.mrb[0].mxu0 %v1846
    %v1917 = vpop.f32.mrb[0].mxu0
    %v1918 = vadd.f32 0.0, %v1917
    %v1919 = vpop.f32.mrb[0].mxu0
    %1920 = vmatprep.mubr.f32.mxu0 0.0
    %1921 = vmatmul.mubr.f32.gmra.mrb[0].mxu0 %v1849
    %v1922 = vpop.f32.mrb[0].mxu0
    %v1923 = vadd.f32 0.0, %v1922
    %v1924 = vpop.f32.mrb[0].mxu0
    %1925 = vdwg.mxu0
    %v1926 = vrcp.pop %v1918
    %v1927 = vmul.f32 %v1842, %v1926
    %v1928 = vrcp.pop %v1923
    %v1929 = vmul.f32 %v1844, %v1928
    %v1931 = vsel %vm548, %v1927, 0
    %v1934 = vsel %vm548, %v1929, 0
    %1936 = vmatprep.subr.mxu0 0.0
    %1937 = vmatpush1.msra.mxu0 %v1722
    %1938 = vmatprep.subr.mxu0 0.0
    %1939 = vmatpush1.msra.mxu0 %v1723
    %1940 = vmatprep.subr.mxu0 0.0
    %1941 = vmatpush1.msra.mxu0 %v1724
    %1942 = vmatprep.subr.mxu0 0.0
    %1943 = vmatpush1.msra.mxu0 %v1725
    %1944 = vmatprep.subr.mxu0 0.0
    %1945 = vmatpush1.msra.mxu0 %v1726
    %1946 = vmatprep.subr.mxu0 0.0
    %1947 = vmatpush1.msra.mxu0 %v1727
    %1948 = vmatprep.subr.mxu0 0.0
    %1949 = vmatpush1.msra.mxu0 %v1728
    %1950 = vmatprep.subr.mxu0 0.0
    %1951 = vmatpush1.msra.mxu0 %v1729
    %1952 = vmatprep.subr.mxu0 0.0
    %1953 = vmatpush1.msra.mxu0 0.0
    %1954 = vmatprep.subr.mxu0 0.0
    %1955 = vmatpush1.msra.mxu0 0.0
    %1956 = vmatprep.subr.mxu0 0.0
    %1957 = vmatpush1.msra.mxu0 0.0
    %1958 = vmatprep.subr.mxu0 0.0
    %1959 = vmatpush1.msra.mxu0 0.0
    %1960 = vmatprep.subr.mxu0 0.0
    %1961 = vmatpush1.msra.mxu0 0.0
    %1962 = vmatprep.subr.mxu0 0.0
    %1963 = vmatpush1.msra.mxu0 0.0
    %1964 = vmatprep.subr.mxu0 0.0
    %1965 = vmatpush1.msra.mxu0 0.0
    %1966 = vmatprep.subr.mxu0 0.0
    %1967 = vmatpush1.msra.mxu0 0.0
    %1968 = vmatprep.subr.mxu0 0.0
    %1969 = vmatpush1.msra.mxu0 0.0
    %1970 = vmatprep.subr.mxu0 0.0
    %1971 = vmatpush1.msra.mxu0 0.0
    %1972 = vmatprep.subr.mxu0 0.0
    %1973 = vmatpush1.msra.mxu0 0.0
    %1974 = vmatprep.subr.mxu0 0.0
    %1975 = vmatpush1.msra.mxu0 0.0
    %1976 = vmatprep.subr.mxu0 0.0
    %1977 = vmatpush1.msra.mxu0 0.0
    %1978 = vmatprep.subr.mxu0 0.0
    %1979 = vmatpush1.msra.mxu0 0.0
    %1980 = vmatprep.subr.mxu0 0.0
    %1981 = vmatpush1.msra.mxu0 0.0
    %1982 = vmatprep.subr.mxu0 0.0
    %1983 = vmatpush1.msra.mxu0 0.0
    %1984 = vmatprep.subr.mxu0 0.0
    %1985 = vmatpush1.msra.mxu0 0.0
    %1986 = vmatprep.subr.mxu0 0.0
    %1987 = vmatpush1.msra.mxu0 0.0
    %1988 = vmatprep.subr.mxu0 0.0
    %1989 = vmatpush1.msra.mxu0 0.0
    %1990 = vmatprep.subr.mxu0 0.0
    %1991 = vmatpush1.msra.mxu0 0.0
    %1992 = vmatprep.subr.mxu0 0.0
    %1993 = vmatpush1.msra.mxu0 0.0
    %1994 = vmatprep.subr.mxu0 0.0
    %1995 = vmatpush1.msra.mxu0 0.0
    %1996 = vmatprep.subr.mxu0 0.0
    %1997 = vmatpush1.msra.mxu0 0.0
    %1998 = vmatprep.subr.mxu0 0.0
    %1999 = vmatpush1.msra.mxu0 0.0
    %2000 = vmatprep.mubr.f32.mxu0 0.0
    %2001 = vmatmul.mubr.f32.gmra.mrb[0].mxu0 %v1931
    %v2002 = vpop.f32.mrb[0].mxu0
    %v2003 = vadd.f32 0.0, %v2002
    %v2004 = vpop.f32.mrb[0].mxu0
    %2005 = vmatprep.mubr.f32.mxu0 0.0
    %2006 = vmatmul.mubr.f32.gmra.mrb[0].mxu0 %v1934
    %v2007 = vpop.f32.mrb[0].mxu0
    %v2008 = vadd.f32 0.0, %v2007
    %v2009 = vpop.f32.mrb[0].mxu0
    %2010 = vdwg.mxu0
    %s2011 = scalar_lea.vmem %s8, 32
    %v2012 = vld [vmem:[%s2011] sm:$0xff]
    %v2013 = vld [vmem:[%s2011 + $0x8] sm:$0xff]
    %v2014 = vld [vmem:[%s2011 + $0x10] sm:$0xff]
    %v2015 = vld [vmem:[%s2011 + $0x18] sm:$0xff]
    %s2016 = scalar_lea.vmem %s9, 1
    %v2017 = vld [vmem:[%s2016] sm:$0x1]
    %v2019 = vlaneseq
    %v2020 = vshrl.u32 %v2019, 7
    %v2021 = vsub.s32 0, %v2020
    %v2022 = vrot.slane %v2017, %v2021
    %v2025 = vsel %vm98, %v2003, 0
    %v2028 = vsel %vm98, %v2008, 0
    %2030 = vmatprep.subr.mxu0 0.0
    %2031 = vmatpush1.msra.mxu0 %v2012
    %2032 = vmatprep.subr.mxu0 0.0
    %2033 = vmatpush1.msra.mxu0 %v2013
    %2034 = vmatprep.subr.mxu0 0.0
    %2035 = vmatpush1.msra.mxu0 %v2014
    %2036 = vmatprep.subr.mxu0 0.0
    %2037 = vmatpush1.msra.mxu0 %v2015
    %2038 = vmatprep.subr.mxu0 0.0
    %2039 = vmatpush1.msra.mxu0 0.0
    %2040 = vmatprep.subr.mxu0 0.0
    %2041 = vmatpush1.msra.mxu0 0.0
    %2042 = vmatprep.subr.mxu0 0.0
    %2043 = vmatpush1.msra.mxu0 0.0
    %2044 = vmatprep.subr.mxu0 0.0
    %2045 = vmatpush1.msra.mxu0 0.0
    %2046 = vmatprep.subr.mxu0 0.0
    %2047 = vmatpush1.msra.mxu0 0.0
    %2048 = vmatprep.subr.mxu0 0.0
    %2049 = vmatpush1.msra.mxu0 0.0
    %2050 = vmatprep.subr.mxu0 0.0
    %2051 = vmatpush1.msra.mxu0 0.0
    %2052 = vmatprep.subr.mxu0 0.0
    %2053 = vmatpush1.msra.mxu0 0.0
    %2054 = vmatprep.subr.mxu0 0.0
    %2055 = vmatpush1.msra.mxu0 0.0
    %2056 = vmatprep.subr.mxu0 0.0
    %2057 = vmatpush1.msra.mxu0 0.0
    %2058 = vmatprep.subr.mxu0 0.0
    %2059 = vmatpush1.msra.mxu0 0.0
    %2060 = vmatprep.subr.mxu0 0.0
    %2061 = vmatpush1.msra.mxu0 0.0
    %2062 = vmatprep.subr.mxu0 0.0
    %2063 = vmatpush1.msra.mxu0 0.0
    %2064 = vmatprep.subr.mxu0 0.0
    %2065 = vmatpush1.msra.mxu0 0.0
    %2066 = vmatprep.subr.mxu0 0.0
    %2067 = vmatpush1.msra.mxu0 0.0
    %2068 = vmatprep.subr.mxu0 0.0
    %2069 = vmatpush1.msra.mxu0 0.0
    %2070 = vmatprep.subr.mxu0 0.0
    %2071 = vmatpush1.msra.mxu0 0.0
    %2072 = vmatprep.subr.mxu0 0.0
    %2073 = vmatpush1.msra.mxu0 0.0
    %2074 = vmatprep.subr.mxu0 0.0
    %2075 = vmatpush1.msra.mxu0 0.0
    %2076 = vmatprep.subr.mxu0 0.0
    %2077 = vmatpush1.msra.mxu0 0.0
    %2078 = vmatprep.subr.mxu0 0.0
    %2079 = vmatpush1.msra.mxu0 0.0
    %2080 = vmatprep.subr.mxu0 0.0
    %2081 = vmatpush1.msra.mxu0 0.0
    %2082 = vmatprep.subr.mxu0 0.0
    %2083 = vmatpush1.msra.mxu0 0.0
    %2084 = vmatprep.subr.mxu0 0.0
    %2085 = vmatpush1.msra.mxu0 0.0
    %2086 = vmatprep.subr.mxu0 0.0
    %2087 = vmatpush1.msra.mxu0 0.0
    %2088 = vmatprep.subr.mxu0 0.0
    %2089 = vmatpush1.msra.mxu0 0.0
    %2090 = vmatprep.subr.mxu0 0.0
    %2091 = vmatpush1.msra.mxu0 0.0
    %2092 = vmatprep.subr.mxu0 0.0
    %2093 = vmatpush1.msra.mxu0 0.0
    %2094 = vmatprep.mubr.f32.mxu0 0.0
    %2095 = vmatmul.mubr.f32.gmra.mrb[0].mxu0 %v2025
    %v2096 = vpop.f32.mrb[0].mxu0
    %v2097 = vadd.f32 %v2022, %v2096
    %v2098 = vpop.f32.mrb[0].mxu0
    %2099 = vmatprep.mubr.f32.mxu0 0.0
    %2100 = vmatmul.mubr.f32.gmra.mrb[0].mxu0 %v2028
    %v2101 = vpop.f32.mrb[0].mxu0
    %v2102 = vadd.f32 %v2022, %v2101
    %v2103 = vpop.f32.mrb[0].mxu0
    %2104 = vdwg.mxu0
    %v2105 = vadd.f32 %v1399, %v2097
    %v2106 = vadd.f32 %v1400, %v2102
    %s2107 = scalar_lea.vmem %s14, 1
    %v2108 = vld [vmem:[%s2107] sm:$0x1]
    %s2109 = scalar_lea.vmem %s15, 1
    %v2110 = vld [vmem:[%s2109] sm:$0x1]
    %v2112 = vsel %vm98, %v2105, 0
    %v2115 = vsel %vm98, %v2106, 0
    %2117 = vmatprep.subr.mxu0 0.0
    %2118 = vmatpush1.msra.mxu0 %v86
    %2119 = vmatprep.subr.mxu0 0.0
    %2120 = vmatpush1.msra.mxu0 %v87
    %2121 = vmatprep.subr.mxu0 0.0
    %2122 = vmatpush1.msra.mxu0 %v88
    %2123 = vmatprep.subr.mxu0 0.0
    %2124 = vmatpush1.msra.mxu0 %v89
    %2125 = vmatprep.subr.mxu0 0.0
    %2126 = vmatpush1.msra.mxu0 0.0
    %2127 = vmatprep.subr.mxu0 0.0
    %2128 = vmatpush1.msra.mxu0 0.0
    %2129 = vmatprep.subr.mxu0 0.0
    %2130 = vmatpush1.msra.mxu0 0.0
    %2131 = vmatprep.subr.mxu0 0.0
    %2132 = vmatpush1.msra.mxu0 0.0
    %2133 = vmatprep.subr.mxu0 0.0
    %2134 = vmatpush1.msra.mxu0 0.0
    %2135 = vmatprep.subr.mxu0 0.0
    %2136 = vmatpush1.msra.mxu0 0.0
    %2137 = vmatprep.subr.mxu0 0.0
    %2138 = vmatpush1.msra.mxu0 0.0
    %2139 = vmatprep.subr.mxu0 0.0
    %2140 = vmatpush1.msra.mxu0 0.0
    %2141 = vmatprep.subr.mxu0 0.0
    %2142 = vmatpush1.msra.mxu0 0.0
    %2143 = vmatprep.subr.mxu0 0.0
    %2144 = vmatpush1.msra.mxu0 0.0
    %2145 = vmatprep.subr.mxu0 0.0
    %2146 = vmatpush1.msra.mxu0 0.0
    %2147 = vmatprep.subr.mxu0 0.0
    %2148 = vmatpush1.msra.mxu0 0.0
    %2149 = vmatprep.subr.mxu0 0.0
    %2150 = vmatpush1.msra.mxu0 0.0
    %2151 = vmatprep.subr.mxu0 0.0
    %2152 = vmatpush1.msra.mxu0 0.0
    %2153 = vmatprep.subr.mxu0 0.0
    %2154 = vmatpush1.msra.mxu0 0.0
    %2155 = vmatprep.subr.mxu0 0.0
    %2156 = vmatpush1.msra.mxu0 0.0
    %2157 = vmatprep.subr.mxu0 0.0
    %2158 = vmatpush1.msra.mxu0 0.0
    %2159 = vmatprep.subr.mxu0 0.0
    %2160 = vmatpush1.msra.mxu0 0.0
    %2161 = vmatprep.subr.mxu0 0.0
    %2162 = vmatpush1.msra.mxu0 0.0
    %2163 = vmatprep.subr.mxu0 0.0
    %2164 = vmatpush1.msra.mxu0 0.0
    %2165 = vmatprep.subr.mxu0 0.0
    %2166 = vmatpush1.msra.mxu0 0.0
    %2167 = vmatprep.subr.mxu0 0.0
    %2168 = vmatpush1.msra.mxu0 0.0
    %2169 = vmatprep.subr.mxu0 0.0
    %2170 = vmatpush1.msra.mxu0 0.0
    %2171 = vmatprep.subr.mxu0 0.0
    %2172 = vmatpush1.msra.mxu0 0.0
    %2173 = vmatprep.subr.mxu0 0.0
    %2174 = vmatpush1.msra.mxu0 0.0
    %2175 = vmatprep.subr.mxu0 0.0
    %2176 = vmatpush1.msra.mxu0 0.0
    %2177 = vmatprep.subr.mxu0 0.0
    %2178 = vmatpush1.msra.mxu0 0.0
    %2179 = vmatprep.subr.mxu0 0.0
    %2180 = vmatpush1.msra.mxu0 0.0
    %2181 = vmatprep.mubr.f32.mxu0 0.0
    %2182 = vmatmul.mubr.f32.gmra.mrb[0].mxu0 %v2112
    %v2183 = vpop.f32.mrb[0].mxu0
    %v2184 = vadd.f32 0.0, %v2183
    %v2185 = vpop.f32.mrb[0].mxu0
    %2186 = vmatprep.mubr.f32.mxu0 0.0
    %2187 = vmatmul.mubr.f32.gmra.mrb[0].mxu0 %v2115
    %v2188 = vpop.f32.mrb[0].mxu0
    %v2189 = vadd.f32 0.0, %v2188
    %v2190 = vpop.f32.mrb[0].mxu0
    %2191 = vdwg.mxu0
    %v2192 = vmul.f32 %v2105, %v2105
    %v2193 = vmul.f32 %v2106, %v2106
    %v2195 = vsel %vm98, %v2192, 0
    %v2198 = vsel %vm98, %v2193, 0
    %2200 = vmatprep.subr.mxu0 0.0
    %2201 = vmatpush1.msra.mxu0 %v86
    %2202 = vmatprep.subr.mxu0 0.0
    %2203 = vmatpush1.msra.mxu0 %v87
    %2204 = vmatprep.subr.mxu0 0.0
    %2205 = vmatpush1.msra.mxu0 %v88
    %2206 = vmatprep.subr.mxu0 0.0
    %2207 = vmatpush1.msra.mxu0 %v89
    %2208 = vmatprep.subr.mxu0 0.0
    %2209 = vmatpush1.msra.mxu0 0.0
    %2210 = vmatprep.subr.mxu0 0.0
    %2211 = vmatpush1.msra.mxu0 0.0
    %2212 = vmatprep.subr.mxu0 0.0
    %2213 = vmatpush1.msra.mxu0 0.0
    %2214 = vmatprep.subr.mxu0 0.0
    %2215 = vmatpush1.msra.mxu0 0.0
    %2216 = vmatprep.subr.mxu0 0.0
    %2217 = vmatpush1.msra.mxu0 0.0
    %2218 = vmatprep.subr.mxu0 0.0
    %2219 = vmatpush1.msra.mxu0 0.0
    %2220 = vmatprep.subr.mxu0 0.0
    %2221 = vmatpush1.msra.mxu0 0.0
    %2222 = vmatprep.subr.mxu0 0.0
    %2223 = vmatpush1.msra.mxu0 0.0
    %2224 = vmatprep.subr.mxu0 0.0
    %2225 = vmatpush1.msra.mxu0 0.0
    %2226 = vmatprep.subr.mxu0 0.0
    %2227 = vmatpush1.msra.mxu0 0.0
    %2228 = vmatprep.subr.mxu0 0.0
    %2229 = vmatpush1.msra.mxu0 0.0
    %2230 = vmatprep.subr.mxu0 0.0
    %2231 = vmatpush1.msra.mxu0 0.0
    %2232 = vmatprep.subr.mxu0 0.0
    %2233 = vmatpush1.msra.mxu0 0.0
    %2234 = vmatprep.subr.mxu0 0.0
    %2235 = vmatpush1.msra.mxu0 0.0
    %2236 = vmatprep.subr.mxu0 0.0
    %2237 = vmatpush1.msra.mxu0 0.0
    %2238 = vmatprep.subr.mxu0 0.0
    %2239 = vmatpush1.msra.mxu0 0.0
    %2240 = vmatprep.subr.mxu0 0.0
    %2241 = vmatpush1.msra.mxu0 0.0
    %2242 = vmatprep.subr.mxu0 0.0
    %2243 = vmatpush1.msra.mxu0 0.0
    %2244 = vmatprep.subr.mxu0 0.0
    %2245 = vmatpush1.msra.mxu0 0.0
    %2246 = vmatprep.subr.mxu0 0.0
    %2247 = vmatpush1.msra.mxu0 0.0
    %2248 = vmatprep.subr.mxu0 0.0
    %2249 = vmatpush1.msra.mxu0 0.0
    %2250 = vmatprep.subr.mxu0 0.0
    %2251 = vmatpush1.msra.mxu0 0.0
    %2252 = vmatprep.subr.mxu0 0.0
    %2253 = vmatpush1.msra.mxu0 0.0
    %2254 = vmatprep.subr.mxu0 0.0
    %2255 = vmatpush1.msra.mxu0 0.0
    %2256 = vmatprep.subr.mxu0 0.0
    %2257 = vmatpush1.msra.mxu0 0.0
    %2258 = vmatprep.subr.mxu0 0.0
    %2259 = vmatpush1.msra.mxu0 0.0
    %2260 = vmatprep.subr.mxu0 0.0
    %2261 = vmatpush1.msra.mxu0 0.0
    %2262 = vmatprep.subr.mxu0 0.0
    %2263 = vmatpush1.msra.mxu0 0.0
    %2264 = vmatprep.mubr.f32.mxu0 0.0
    %2265 = vmatmul.mubr.f32.gmra.mrb[0].mxu0 %v2195
    %v2266 = vpop.f32.mrb[0].mxu0
    %v2267 = vadd.f32 0.0, %v2266
    %v2268 = vpop.f32.mrb[0].mxu0
    %2269 = vmatprep.mubr.f32.mxu0 0.0
    %2270 = vmatmul.mubr.f32.gmra.mrb[0].mxu0 %v2198
    %v2271 = vpop.f32.mrb[0].mxu0
    %v2272 = vadd.f32 0.0, %v2271
    %v2273 = vpop.f32.mrb[0].mxu0
    %2274 = vdwg.mxu0
    %v2275 = vmul.f32 %v2184, %v2184
    %v2276 = vmul.f32 %v2189, %v2189
    %v2277 = vsub.f32 %v2267, %v2275
    %v2278 = vsub.f32 %v2272, %v2276
    %v2279 = vsub.f32 %v2105, %v2184
    %v2280 = vsub.f32 %v2106, %v2189
    %v2281 = vadd.f32 %v2277, 1e-05
    %v2282 = vadd.f32 %v2278, 1e-05
    %v2283 = vrsqrt.pop %v2281
    %v2284 = vrsqrt.pop %v2282
    %v2285 = vmul.f32 %v2279, %v2283
    %v2286 = vmul.f32 %v2280, %v2284
    %v2288 = vlaneseq
    %v2289 = vshrl.u32 %v2288, 7
    %v2290 = vsub.s32 0, %v2289
    %v2291 = vrot.slane %v2108, %v2290
    %v2293 = vmul.f32 %v2285, %v2291
    %v2294 = vmul.f32 %v2286, %v2291
    %v2296 = vlaneseq
    %v2297 = vshrl.u32 %v2296, 7
    %v2298 = vsub.s32 0, %v2297
    %v2299 = vrot.slane %v2110, %v2298
    %v2301 = vadd.f32 %v2293, %v2299
    %v2302 = vadd.f32 %v2294, %v2299
    %s2303 = scalar_lea.vmem %s10, 32
    %v2304 = vld [vmem:[%s2303] sm:$0xff]
    %v2305 = vld [vmem:[%s2303 + $0x8] sm:$0xff]
    %v2306 = vld [vmem:[%s2303 + $0x10] sm:$0xff]
    %v2307 = vld [vmem:[%s2303 + $0x18] sm:$0xff]
    %s2308 = scalar_lea.vmem %s11, 1
    %v2309 = vld [vmem:[%s2308] sm:$0x1]
    %v2311 = vlaneseq
    %v2312 = vshrl.u32 %v2311, 7
    %v2313 = vsub.s32 0, %v2312
    %v2314 = vrot.slane %v2309, %v2313
    %v2317 = vsel %vm98, %v2301, 0
    %v2320 = vsel %vm98, %v2302, 0
    %2322 = vmatprep.subr.mxu0 0.0
    %2323 = vmatpush1.msra.mxu0 %v2304
    %2324 = vmatprep.subr.mxu0 0.0
    %2325 = vmatpush1.msra.mxu0 %v2305
    %2326 = vmatprep.subr.mxu0 0.0
    %2327 = vmatpush1.msra.mxu0 %v2306
    %2328 = vmatprep.subr.mxu0 0.0
    %2329 = vmatpush1.msra.mxu0 %v2307
    %2330 = vmatprep.subr.mxu0 0.0
    %2331 = vmatpush1.msra.mxu0 0.0
    %2332 = vmatprep.subr.mxu0 0.0
    %2333 = vmatpush1.msra.mxu0 0.0
    %2334 = vmatprep.subr.mxu0 0.0
    %2335 = vmatpush1.msra.mxu0 0.0
    %2336 = vmatprep.subr.mxu0 0.0
    %2337 = vmatpush1.msra.mxu0 0.0
    %2338 = vmatprep.subr.mxu0 0.0
    %2339 = vmatpush1.msra.mxu0 0.0
    %2340 = vmatprep.subr.mxu0 0.0
    %2341 = vmatpush1.msra.mxu0 0.0
    %2342 = vmatprep.subr.mxu0 0.0
    %2343 = vmatpush1.msra.mxu0 0.0
    %2344 = vmatprep.subr.mxu0 0.0
    %2345 = vmatpush1.msra.mxu0 0.0
    %2346 = vmatprep.subr.mxu0 0.0
    %2347 = vmatpush1.msra.mxu0 0.0
    %2348 = vmatprep.subr.mxu0 0.0
    %2349 = vmatpush1.msra.mxu0 0.0
    %2350 = vmatprep.subr.mxu0 0.0
    %2351 = vmatpush1.msra.mxu0 0.0
    %2352 = vmatprep.subr.mxu0 0.0
    %2353 = vmatpush1.msra.mxu0 0.0
    %2354 = vmatprep.subr.mxu0 0.0
    %2355 = vmatpush1.msra.mxu0 0.0
    %2356 = vmatprep.subr.mxu0 0.0
    %2357 = vmatpush1.msra.mxu0 0.0
    %2358 = vmatprep.subr.mxu0 0.0
    %2359 = vmatpush1.msra.mxu0 0.0
    %2360 = vmatprep.subr.mxu0 0.0
    %2361 = vmatpush1.msra.mxu0 0.0
    %2362 = vmatprep.subr.mxu0 0.0
    %2363 = vmatpush1.msra.mxu0 0.0
    %2364 = vmatprep.subr.mxu0 0.0
    %2365 = vmatpush1.msra.mxu0 0.0
    %2366 = vmatprep.subr.mxu0 0.0
    %2367 = vmatpush1.msra.mxu0 0.0
    %2368 = vmatprep.subr.mxu0 0.0
    %2369 = vmatpush1.msra.mxu0 0.0
    %2370 = vmatprep.subr.mxu0 0.0
    %2371 = vmatpush1.msra.mxu0 0.0
    %2372 = vmatprep.subr.mxu0 0.0
    %2373 = vmatpush1.msra.mxu0 0.0
    %2374 = vmatprep.subr.mxu0 0.0
    %2375 = vmatpush1.msra.mxu0 0.0
    %2376 = vmatprep.subr.mxu0 0.0
    %2377 = vmatpush1.msra.mxu0 0.0
    %2378 = vmatprep.subr.mxu0 0.0
    %2379 = vmatpush1.msra.mxu0 0.0
    %2380 = vmatprep.subr.mxu0 0.0
    %2381 = vmatpush1.msra.mxu0 0.0
    %2382 = vmatprep.subr.mxu0 0.0
    %2383 = vmatpush1.msra.mxu0 0.0
    %2384 = vmatprep.subr.mxu0 0.0
    %2385 = vmatpush1.msra.mxu0 0.0
    %2386 = vmatprep.mubr.f32.mxu0 0.0
    %2387 = vmatmul.mubr.f32.gmra.mrb[0].mxu0 %v2317
    %v2388 = vpop.f32.mrb[0].mxu0
    %v2389 = vadd.f32 %v2314, %v2388
    %v2390 = vpop.f32.mrb[0].mxu0
    %2391 = vmatprep.mubr.f32.mxu0 0.0
    %2392 = vmatmul.mubr.f32.gmra.mrb[0].mxu0 %v2320
    %v2393 = vpop.f32.mrb[0].mxu0
    %v2394 = vadd.f32 %v2314, %v2393
    %v2395 = vpop.f32.mrb[0].mxu0
    %2396 = vdwg.mxu0
    %v2397 = vmax.f32 %v2389, 0.0
    %v2398 = vmax.f32 %v2394, 0.0
    %s2399 = scalar_lea.vmem %s12, 64
    %v2400 = vld [vmem:[%s2399] sm:$0xff]
    %v2401 = vld [vmem:[%s2399 + $0x8] sm:$0xff]
    %v2402 = vld [vmem:[%s2399 + $0x10] sm:$0xff]
    %v2403 = vld [vmem:[%s2399 + $0x18] sm:$0xff]
    %v2404 = vld [vmem:[%s2399 + $0x20] sm:$0xff]
    %v2405 = vld [vmem:[%s2399 + $0x28] sm:$0xff]
    %v2406 = vld [vmem:[%s2399 + $0x30] sm:$0xff]
    %v2407 = vld [vmem:[%s2399 + $0x38] sm:$0xff]
    %s2408 = scalar_lea.vmem %s13, 1
    %v2409 = vld [vmem:[%s2408] sm:$0x1]
    %v2411 = vlaneseq
    %v2412 = vshrl.u32 %v2411, 7
    %v2413 = vsub.s32 0, %v2412
    %v2414 = vrot.slane %v2409, %v2413
    %v2417 = vsel %vm548, %v2397, 0
    %v2420 = vsel %vm548, %v2398, 0
    %2422 = vmatprep.subr.mxu0 0.0
    %2423 = vmatpush1.msra.mxu0 %v2400
    %2424 = vmatprep.subr.mxu0 0.0
    %2425 = vmatpush1.msra.mxu0 %v2401
    %2426 = vmatprep.subr.mxu0 0.0
    %2427 = vmatpush1.msra.mxu0 %v2402
    %2428 = vmatprep.subr.mxu0 0.0
    %2429 = vmatpush1.msra.mxu0 %v2403
    %2430 = vmatprep.subr.mxu0 0.0
    %2431 = vmatpush1.msra.mxu0 %v2404
    %2432 = vmatprep.subr.mxu0 0.0
    %2433 = vmatpush1.msra.mxu0 %v2405
    %2434 = vmatprep.subr.mxu0 0.0
    %2435 = vmatpush1.msra.mxu0 %v2406
    %2436 = vmatprep.subr.mxu0 0.0
    %2437 = vmatpush1.msra.mxu0 %v2407
    %2438 = vmatprep.subr.mxu0 0.0
    %2439 = vmatpush1.msra.mxu0 0.0
    %2440 = vmatprep.subr.mxu0 0.0
    %2441 = vmatpush1.msra.mxu0 0.0
    %2442 = vmatprep.subr.mxu0 0.0
    %2443 = vmatpush1.msra.mxu0 0.0
    %2444 = vmatprep.subr.mxu0 0.0
    %2445 = vmatpush1.msra.mxu0 0.0
    %2446 = vmatprep.subr.mxu0 0.0
    %2447 = vmatpush1.msra.mxu0 0.0
    %2448 = vmatprep.subr.mxu0 0.0
    %2449 = vmatpush1.msra.mxu0 0.0
    %2450 = vmatprep.subr.mxu0 0.0
    %2451 = vmatpush1.msra.mxu0 0.0
    %2452 = vmatprep.subr.mxu0 0.0
    %2453 = vmatpush1.msra.mxu0 0.0
    %2454 = vmatprep.subr.mxu0 0.0
    %2455 = vmatpush1.msra.mxu0 0.0
    %2456 = vmatprep.subr.mxu0 0.0
    %2457 = vmatpush1.msra.mxu0 0.0
    %2458 = vmatprep.subr.mxu0 0.0
    %2459 = vmatpush1.msra.mxu0 0.0
    %2460 = vmatprep.subr.mxu0 0.0
    %2461 = vmatpush1.msra.mxu0 0.0
    %2462 = vmatprep.subr.mxu0 0.0
    %2463 = vmatpush1.msra.mxu0 0.0
    %2464 = vmatprep.subr.mxu0 0.0
    %2465 = vmatpush1.msra.mxu0 0.0
    %2466 = vmatprep.subr.mxu0 0.0
    %2467 = vmatpush1.msra.mxu0 0.0
    %2468 = vmatprep.subr.mxu0 0.0
    %2469 = vmatpush1.msra.mxu0 0.0
    %2470 = vmatprep.subr.mxu0 0.0
    %2471 = vmatpush1.msra.mxu0 0.0
    %2472 = vmatprep.subr.mxu0 0.0
    %2473 = vmatpush1.msra.mxu0 0.0
    %2474 = vmatprep.subr.mxu0 0.0
    %2475 = vmatpush1.msra.mxu0 0.0
    %2476 = vmatprep.subr.mxu0 0.0
    %2477 = vmatpush1.msra.mxu0 0.0
    %2478 = vmatprep.subr.mxu0 0.0
    %2479 = vmatpush1.msra.mxu0 0.0
    %2480 = vmatprep.subr.mxu0 0.0
    %2481 = vmatpush1.msra.mxu0 0.0
    %2482 = vmatprep.subr.mxu0 0.0
    %2483 = vmatpush1.msra.mxu0 0.0
    %2484 = vmatprep.subr.mxu0 0.0
    %2485 = vmatpush1.msra.mxu0 0.0
    %2486 = vmatprep.mubr.f32.mxu0 0.0
    %2487 = vmatmul.mubr.f32.gmra.mrb[0].mxu0 %v2417
    %v2488 = vpop.f32.mrb[0].mxu0
    %v2489 = vadd.f32 %v2414, %v2488
    %v2490 = vpop.f32.mrb[0].mxu0
    %2491 = vmatprep.mubr.f32.mxu0 0.0
    %2492 = vmatmul.mubr.f32.gmra.mrb[0].mxu0 %v2420
    %v2493 = vpop.f32.mrb[0].mxu0
    %v2494 = vadd.f32 %v2414, %v2493
    %v2495 = vpop.f32.mrb[0].mxu0
    %2496 = vdwg.mxu0
    %v2497 = vadd.f32 %v2301, %v2489
    %v2498 = vadd.f32 %v2302, %v2494
    %s2499 = scalar_lea.vmem %s16, 1
    %v2500 = vld [vmem:[%s2499] sm:$0x1]
    %s2501 = scalar_lea.vmem %s17, 1
    %v2502 = vld [vmem:[%s2501] sm:$0x1]
    %v2504 = vsel %vm98, %v2497, 0
    %v2507 = vsel %vm98, %v2498, 0
    %2509 = vmatprep.subr.mxu0 0.0
    %2510 = vmatpush1.msra.mxu0 %v86
    %2511 = vmatprep.subr.mxu0 0.0
    %2512 = vmatpush1.msra.mxu0 %v87
    %2513 = vmatprep.subr.mxu0 0.0
    %2514 = vmatpush1.msra.mxu0 %v88
    %2515 = vmatprep.subr.mxu0 0.0
    %2516 = vmatpush1.msra.mxu0 %v89
    %2517 = vmatprep.subr.mxu0 0.0
    %2518 = vmatpush1.msra.mxu0 0.0
    %2519 = vmatprep.subr.mxu0 0.0
    %2520 = vmatpush1.msra.mxu0 0.0
    %2521 = vmatprep.subr.mxu0 0.0
    %2522 = vmatpush1.msra.mxu0 0.0
    %2523 = vmatprep.subr.mxu0 0.0
    %2524 = vmatpush1.msra.mxu0 0.0
    %2525 = vmatprep.subr.mxu0 0.0
    %2526 = vmatpush1.msra.mxu0 0.0
    %2527 = vmatprep.subr.mxu0 0.0
    %2528 = vmatpush1.msra.mxu0 0.0
    %2529 = vmatprep.subr.mxu0 0.0
    %2530 = vmatpush1.msra.mxu0 0.0
    %2531 = vmatprep.subr.mxu0 0.0
    %2532 = vmatpush1.msra.mxu0 0.0
    %2533 = vmatprep.subr.mxu0 0.0
    %2534 = vmatpush1.msra.mxu0 0.0
    %2535 = vmatprep.subr.mxu0 0.0
    %2536 = vmatpush1.msra.mxu0 0.0
    %2537 = vmatprep.subr.mxu0 0.0
    %2538 = vmatpush1.msra.mxu0 0.0
    %2539 = vmatprep.subr.mxu0 0.0
    %2540 = vmatpush1.msra.mxu0 0.0
    %2541 = vmatprep.subr.mxu0 0.0
    %2542 = vmatpush1.msra.mxu0 0.0
    %2543 = vmatprep.subr.mxu0 0.0
    %2544 = vmatpush1.msra.mxu0 0.0
    %2545 = vmatprep.subr.mxu0 0.0
    %2546 = vmatpush1.msra.mxu0 0.0
    %2547 = vmatprep.subr.mxu0 0.0
    %2548 = vmatpush1.msra.mxu0 0.0
    %2549 = vmatprep.subr.mxu0 0.0
    %2550 = vmatpush1.msra.mxu0 0.0
    %2551 = vmatprep.subr.mxu0 0.0
    %2552 = vmatpush1.msra.mxu0 0.0
    %2553 = vmatprep.subr.mxu0 0.0
    %2554 = vmatpush1.msra.mxu0 0.0
    %2555 = vmatprep.subr.mxu0 0.0
    %2556 = vmatpush1.msra.mxu0 0.0
    %2557 = vmatprep.subr.mxu0 0.0
    %2558 = vmatpush1.msra.mxu0 0.0
    %2559 = vmatprep.subr.mxu0 0.0
    %2560 = vmatpush1.msra.mxu0 0.0
    %2561 = vmatprep.subr.mxu0 0.0
    %2562 = vmatpush1.msra.mxu0 0.0
    %2563 = vmatprep.subr.mxu0 0.0
    %2564 = vmatpush1.msra.mxu0 0.0
    %2565 = vmatprep.subr.mxu0 0.0
    %2566 = vmatpush1.msra.mxu0 0.0
    %2567 = vmatprep.subr.mxu0 0.0
    %2568 = vmatpush1.msra.mxu0 0.0
    %2569 = vmatprep.subr.mxu0 0.0
    %2570 = vmatpush1.msra.mxu0 0.0
    %2571 = vmatprep.subr.mxu0 0.0
    %2572 = vmatpush1.msra.mxu0 0.0
    %2573 = vmatprep.mubr.f32.mxu0 0.0
    %2574 = vmatmul.mubr.f32.gmra.mrb[0].mxu0 %v2504
    %v2575 = vpop.f32.mrb[0].mxu0
    %v2576 = vadd.f32 0.0, %v2575
    %v2577 = vpop.f32.mrb[0].mxu0
    %2578 = vmatprep.mubr.f32.mxu0 0.0
    %2579 = vmatmul.mubr.f32.gmra.mrb[0].mxu0 %v2507
    %v2580 = vpop.f32.mrb[0].mxu0
    %v2581 = vadd.f32 0.0, %v2580
    %v2582 = vpop.f32.mrb[0].mxu0
    %2583 = vdwg.mxu0
    %v2584 = vmul.f32 %v2497, %v2497
    %v2585 = vmul.f32 %v2498, %v2498
    %v2587 = vsel %vm98, %v2584, 0
    %v2590 = vsel %vm98, %v2585, 0
    %2592 = vmatprep.subr.mxu0 0.0
    %2593 = vmatpush1.msra.mxu0 %v86
    %2594 = vmatprep.subr.mxu0 0.0
    %2595 = vmatpush1.msra.mxu0 %v87
    %2596 = vmatprep.subr.mxu0 0.0
    %2597 = vmatpush1.msra.mxu0 %v88
    %2598 = vmatprep.subr.mxu0 0.0
    %2599 = vmatpush1.msra.mxu0 %v89
    %2600 = vmatprep.subr.mxu0 0.0
    %2601 = vmatpush1.msra.mxu0 0.0
    %2602 = vmatprep.subr.mxu0 0.0
    %2603 = vmatpush1.msra.mxu0 0.0
    %2604 = vmatprep.subr.mxu0 0.0
    %2605 = vmatpush1.msra.mxu0 0.0
    %2606 = vmatprep.subr.mxu0 0.0
    %2607 = vmatpush1.msra.mxu0 0.0
    %2608 = vmatprep.subr.mxu0 0.0
    %2609 = vmatpush1.msra.mxu0 0.0
    %2610 = vmatprep.subr.mxu0 0.0
    %2611 = vmatpush1.msra.mxu0 0.0
    %2612 = vmatprep.subr.mxu0 0.0
    %2613 = vmatpush1.msra.mxu0 0.0
    %2614 = vmatprep.subr.mxu0 0.0
    %2615 = vmatpush1.msra.mxu0 0.0
    %2616 = vmatprep.subr.mxu0 0.0
    %2617 = vmatpush1.msra.mxu0 0.0
    %2618 = vmatprep.subr.mxu0 0.0
    %2619 = vmatpush1.msra.mxu0 0.0
    %2620 = vmatprep.subr.mxu0 0.0
    %2621 = vmatpush1.msra.mxu0 0.0
    %2622 = vmatprep.subr.mxu0 0.0
    %2623 = vmatpush1.msra.mxu0 0.0
    %2624 = vmatprep.subr.mxu0 0.0
    %2625 = vmatpush1.msra.mxu0 0.0
    %2626 = vmatprep.subr.mxu0 0.0
    %2627 = vmatpush1.msra.mxu0 0.0
    %2628 = vmatprep.subr.mxu0 0.0
    %2629 = vmatpush1.msra.mxu0 0.0
    %2630 = vmatprep.subr.mxu0 0.0
    %2631 = vmatpush1.msra.mxu0 0.0
    %2632 = vmatprep.subr.mxu0 0.0
    %2633 = vmatpush1.msra.mxu0 0.0
    %2634 = vmatprep.subr.mxu0 0.0
    %2635 = vmatpush1.msra.mxu0 0.0
    %2636 = vmatprep.subr.mxu0 0.0
    %2637 = vmatpush1.msra.mxu0 0.0
    %2638 = vmatprep.subr.mxu0 0.0
    %2639 = vmatpush1.msra.mxu0 0.0
    %2640 = vmatprep.subr.mxu0 0.0
    %2641 = vmatpush1.msra.mxu0 0.0
    %2642 = vmatprep.subr.mxu0 0.0
    %2643 = vmatpush1.msra.mxu0 0.0
    %2644 = vmatprep.subr.mxu0 0.0
    %2645 = vmatpush1.msra.mxu0 0.0
    %2646 = vmatprep.subr.mxu0 0.0
    %2647 = vmatpush1.msra.mxu0 0.0
    %2648 = vmatprep.subr.mxu0 0.0
    %2649 = vmatpush1.msra.mxu0 0.0
    %2650 = vmatprep.subr.mxu0 0.0
    %2651 = vmatpush1.msra.mxu0 0.0
    %2652 = vmatprep.subr.mxu0 0.0
    %2653 = vmatpush1.msra.mxu0 0.0
    %2654 = vmatprep.subr.mxu0 0.0
    %2655 = vmatpush1.msra.mxu0 0.0
    %2656 = vmatprep.mubr.f32.mxu0 0.0
    %2657 = vmatmul.mubr.f32.gmra.mrb[0].mxu0 %v2587
    %v2658 = vpop.f32.mrb[0].mxu0
    %v2659 = vadd.f32 0.0, %v2658
    %v2660 = vpop.f32.mrb[0].mxu0
    %2661 = vmatprep.mubr.f32.mxu0 0.0
    %2662 = vmatmul.mubr.f32.gmra.mrb[0].mxu0 %v2590
    %v2663 = vpop.f32.mrb[0].mxu0
    %v2664 = vadd.f32 0.0, %v2663
    %v2665 = vpop.f32.mrb[0].mxu0
    %2666 = vdwg.mxu0
    %v2667 = vmul.f32 %v2576, %v2576
    %v2668 = vmul.f32 %v2581, %v2581
    %v2669 = vsub.f32 %v2659, %v2667
    %v2670 = vsub.f32 %v2664, %v2668
    %v2671 = vsub.f32 %v2497, %v2576
    %v2672 = vsub.f32 %v2498, %v2581
    %v2673 = vadd.f32 %v2669, 1e-05
    %v2674 = vadd.f32 %v2670, 1e-05
    %v2675 = vrsqrt.pop %v2673
    %v2676 = vrsqrt.pop %v2674
    %v2677 = vmul.f32 %v2671, %v2675
    %v2678 = vmul.f32 %v2672, %v2676
    %v2680 = vlaneseq
    %v2681 = vshrl.u32 %v2680, 7
    %v2682 = vsub.s32 0, %v2681
    %v2683 = vrot.slane %v2500, %v2682
    %v2685 = vmul.f32 %v2677, %v2683
    %v2686 = vmul.f32 %v2678, %v2683
    %v2688 = vlaneseq
    %v2689 = vshrl.u32 %v2688, 7
    %v2690 = vsub.s32 0, %v2689
    %v2691 = vrot.slane %v2502, %v2690
    %v2693 = vadd.f32 %v2685, %v2691
    %v2694 = vadd.f32 %v2686, %v2691
    %2695 = vst.msk [vmem:[#allocation2] sm:$0xff] %vm98, %v2693
    %2696 = vst.msk [vmem:[#allocation2 + $0x8] sm:$0xff] %vm98, %v2694
    // Predicated region
    $region74: #{transformer_encoder.1} parent=1 // pred_check
      _
    $region75: #{transformer_encoder.1} parent=1 // pred_check_branch
      %2698 = sbr.rel (0) target = $region77
    $region76: #{transformer_encoder.1} parent=1 // pred_region
      %s2700 = ssub.s32 256, 256
      %2701 = vsyncadd [#allocation3], %s2700
      %s2702 = sshll.u32 [#allocation2], 4
      %s2703 = int_to_ptr.vmem [resolvable:$true] %s2702
      %2708 = dma.vmem_to_hbm [thread:$0]  %s2703, 256, %s18, [#allocation3], 128, 128, 8
    $region77: #{transformer_encoder.1} parent=1 // pred_fallthru
      _
    // Predicated region
    $region78: #{transformer_encoder.1} parent=1 // pred_check
      _
    $region79: #{transformer_encoder.1} parent=1 // pred_check_branch
      %2710 = sbr.rel (0) target = $region81
    $region80: #{transformer_encoder.1} parent=1 // pred_region
      %2711 = dma.done [#allocation3], 256
    $region81: #{transformer_encoder.1} parent=1 // pred_fallthru
      _
    %2712 = vsyncpa [#allocation3], 1

</llo_original>
